<compile_context>
chip_gen: v5e
topology: v5e:2x2
jax: 0.10.0
libtpu: 0.0.40
codegen_flags: <defaults>
</compile_context>

<pallas_src>
import functools

import jax
import jax.numpy as jnp
import numpy as np
from jax.experimental import pallas as pl
from jax.experimental.pallas import tpu as pltpu


# ---------------------------------------------------------------------------
# Kernel 1: fused push-pull conv (3x3 'same') + ReLU + 2x2 max-pool,
#           one (image, row-band) tile per grid step.
# ---------------------------------------------------------------------------
def _pushpull_pool_kernel(p_ref, w_ref, b_ref, o_ref, *, BH, W, KC, Cout, alpha):
    # p_ref: (1, 1, BH+2, W, KC)  bf16 im2col patches for conv rows [g0-1, g0+BH]
    #                              (out-of-image halo rows are already zero)
    # w_ref: (KC, Cout)            bf16 push weights, row idx = (ky*3+kx)*C + c
    # b_ref: (1, Cout)             f32 push bias
    # o_ref: (1, 1, (BH//2)*(W//2), Cout)  bf16 pooled output band (NHWC order)
    R = BH + 2

    patches = p_ref[0, 0].reshape(R * W, KC)          # collapse leading dims
    # single K=9*C MXU matmul, f32 accumulate
    conv = jnp.dot(patches, w_ref[...], preferred_element_type=jnp.float32)
    conv3 = conv.reshape(R, W, Cout)                  # (BH+2, W, Cout)

    push = conv3[1:BH + 1] + b_ref[...]               # conv(x, W) + bias
    pull = -conv3                                     # conv(x, -W), no bias

    # 3x3 stride-1 'same' average pool of the pull response, separable:
    # vertical via the halo rows (no padded buffer needed),
    vert = pull[0:BH] + pull[1:BH + 1] + pull[2:BH + 2]        # (BH, W, Cout)
    # horizontal via two XLU sublane rolls + edge masks (no padded temp).
    n = BH * W
    vert2 = vert.reshape(n, Cout)                              # leading collapse
    left = pltpu.roll(vert2, shift=1, axis=0).reshape(BH, W, Cout)
    right = pltpu.roll(vert2, shift=n - 1, axis=0).reshape(BH, W, Cout)
    wcol = jax.lax.broadcasted_iota(jnp.int32, (BH, W, Cout), 1)
    left = jnp.where(wcol == 0, 0.0, left)                     # zero 'same' pad
    right = jnp.where(wcol == W - 1, 0.0, right)
    pull_avg = (left + vert + right) * (1.0 / 9.0)

    pp = jnp.maximum(push, 0.0) - alpha * jnp.maximum(pull_avg, 0.0)

    y = jnp.maximum(pp, 0.0)                          # classifier ReLU
    y = y.reshape(BH // 2, 2, W // 2, 2, Cout)        # 2x2 max-pool, stride 2
    y = jnp.maximum(y[:, 0], y[:, 1])                 # (BH//2, W//2, 2, Cout)
    y = jnp.maximum(y[:, :, 0], y[:, :, 1])           # (BH//2, W//2, Cout)

    # single full-block store, NHWC flatten order preserved
    o_ref[0, 0] = y.reshape((BH // 2) * (W // 2), Cout).astype(o_ref.dtype)


def pushpull_conv_block(x_nhwc, conv_w, conv_b, alpha, band_h=16):
    """Returns the pooled feature map flattened in NHWC order: (N, Hp*Wp*Cout), bf16."""
    N, H, W, C = x_nhwc.shape
    Cout = conv_w.shape[-1]
    assert H % 2 == 0 and W % 2 == 0
    BH = min(band_h, H)
    assert H % BH == 0 and BH % 2 == 0
    nbands = H // BH
    KC = 9 * C

    # ---- wrapper-side tap folding (bf16, one fused copy) ----
    # patches[n, g, w, (ky*3+kx)*C + c] = x[n, g+ky-1, w+kx-1, c]  (zero-pad)
    xpad = jnp.pad(x_nhwc, ((0, 0), (1, 1), (1, 1), (0, 0)))
    taps = [xpad[:, ky:ky + H, kx:kx + W, :] for ky in range(3) for kx in range(3)]
    patches = jnp.concatenate(taps, axis=-1).astype(jnp.bfloat16)  # (N, H, W, 9C)
    # conv rows g=-1 and g=H contribute exactly zero to the 'same' avg pool:
    pfull = jnp.pad(patches, ((0, 0), (1, 1), (0, 0), (0, 0)))     # (N, H+2, W, 9C)
    if nbands == 1:
        bands = pfull[:, None]                                     # no extra copy
    else:
        # TODO(synk): a manual-DMA halo fetch (memory_space=pl.ANY) would drop
        # this copy entirely; with BH=16 the halo duplication is only ~12%.
        bands = jnp.stack([pfull[:, r * BH:r * BH + BH + 2] for r in range(nbands)],
                          axis=1)                                  # (N, nb, BH+2, W, 9C)

    w27 = conv_w.reshape(KC, Cout).astype(jnp.bfloat16)
    b2d = conv_b.reshape(1, Cout)

    kernel = functools.partial(_pushpull_pool_kernel, BH=BH, W=W, KC=KC,
                               Cout=Cout, alpha=float(alpha))
    out = pl.pallas_call(
        kernel,
        out_shape=jax.ShapeDtypeStruct((N, nbands, (BH // 2) * (W // 2), Cout),
                                       jnp.bfloat16),
        grid_spec=pltpu.PrefetchScalarGridSpec(
            num_scalar_prefetch=0,
            grid=(N, nbands),
            in_specs=[
                pl.BlockSpec((1, 1, BH + 2, W, KC), lambda n, r: (n, r, 0, 0, 0)),
                pl.BlockSpec((KC, Cout), lambda n, r: (0, 0)),
                pl.BlockSpec((1, Cout), lambda n, r: (0, 0)),
            ],
            out_specs=pl.BlockSpec((1, 1, (BH // 2) * (W // 2), Cout),
                                   lambda n, r: (n, r, 0, 0)),
        ),
        compiler_params=pltpu.CompilerParams(
            dimension_semantics=("parallel", "parallel"),
            vmem_limit_bytes=32 << 20),
    )(bands, w27, b2d)

    # (N, nbands, (BH//2)*(W//2), Cout) -> (N, Hp*Wp*Cout), NHWC flatten order
    return out.reshape(N, -1)


# ---------------------------------------------------------------------------
# Kernel 2: K-tiled fc1 (bf16 x, bf16 w, f32 acc) + bias + ReLU + fc2-half,
#           grid = (2 parallel H1-halves, K//tk arbitrary).  Each half emits
#           partial logits; the wrapper sums the halves and adds fc2 bias.
# ---------------------------------------------------------------------------
def _mlp_kernel(x_ref, w1_ref, b1_ref, w2_ref, o_ref, acc_ref):
    @pl.when(pl.program_id(1) == 0)
    def _():
        acc_ref[...] = jnp.zeros_like(acc_ref)

    acc_ref[...] += jnp.dot(x_ref[...], w1_ref[...],
                            preferred_element_type=jnp.float32)

    @pl.when(pl.program_id(1) == pl.num_programs(1) - 1)
    def _():
        h = jnp.maximum(acc_ref[...] + b1_ref[...], 0.0)
        o_ref[0] = jnp.dot(h, w2_ref[...],
                           preferred_element_type=jnp.float32).astype(o_ref.dtype)


def mlp_head(x_flat, w1_bf16, b1, w2, b2, tk=16384):
    B, K = x_flat.shape
    H1 = w1_bf16.shape[1]
    NC = w2.shape[1]
    assert H1 % 2 == 0
    Hh = H1 // 2
    tk = min(tk, K)
    while K % tk:              # shrink to a divisor of K (stays 16384 at 224x224)
        tk //= 2
    # w1 block = tk*Hh*2B = 8 MiB at tk=16384 -> 16 MiB double-buffered: fits the
    # 40 MiB limit on every generation (incl. v7x's 64 MiB physical VMEM).
    partials = pl.pallas_call(
        _mlp_kernel,
        out_shape=jax.ShapeDtypeStruct((2, B, NC), jnp.float32),
        grid_spec=pltpu.PrefetchScalarGridSpec(
            num_scalar_prefetch=0,
            grid=(2, K // tk),
            in_specs=[
                pl.BlockSpec((B, tk), lambda j, k: (0, k)),
                pl.BlockSpec((tk, Hh), lambda j, k: (k, j)),
                pl.BlockSpec((1, Hh), lambda j, k: (0, j)),
                pl.BlockSpec((Hh, NC), lambda j, k: (j, 0)),
            ],
            out_specs=pl.BlockSpec((1, B, NC), lambda j, k: (j, 0, 0)),
            scratch_shapes=[pltpu.VMEM((B, Hh), jnp.float32)],
        ),
        compiler_params=pltpu.CompilerParams(
            dimension_semantics=("parallel", "arbitrary"),
            vmem_limit_bytes=40 << 20),
    )(x_flat, w1_bf16, b1, w2)
    # TODO(synk): optional int8 (v5e/v6e) / fp8 (v7x) fc1-weight quantization
    # would halve the dominant HBM stream again; left out to keep numerics tight.
    return partials[0] + partials[1] + b2


# ---------------------------------------------------------------------------
# Full forward + deterministic parameter init + pure-JAX reference
# ---------------------------------------------------------------------------
def meat_classifier_forward(x_nchw, pparams):
    x_nhwc = jnp.transpose(x_nchw, (0, 2, 3, 1))
    flat = pushpull_conv_block(x_nhwc, pparams["conv_w"], pparams["conv_b"],
                               pparams["alpha"])
    return mlp_head(flat, pparams["fc1_w_nhwc"], pparams["fc1_b"],
                    pparams["fc2_w"], pparams["fc2_b"])


def init_params(key, H, W, num_classes=3):
    """Parameters in PyTorch layout (fc1 rows indexed by NCHW flatten order)."""
    C, Cout = 3, 64
    k1, k2, k3, k4, k5, k6 = jax.random.split(key, 6)
    bc = 1.0 / np.sqrt(C * 3 * 3)
    conv_w = jax.random.uniform(k1, (3, 3, C, Cout), jnp.float32, -bc, bc)
    conv_b = jax.random.uniform(k2, (Cout,), jnp.float32, -bc, bc)
    fc1_in = Cout * (H // 2) * (W // 2)
    b1 = 1.0 / np.sqrt(fc1_in)
    fc1_w = jax.random.uniform(k3, (fc1_in, 512), jnp.float32, -b1, b1)
    fc1_b = jax.random.uniform(k4, (1, 512), jnp.float32, -b1, b1)
    b2 = 1.0 / np.sqrt(512)
    fc2_w = jax.random.uniform(k5, (512, num_classes), jnp.float32, -b2, b2)
    fc2_b = jax.random.uniform(k6, (1, num_classes), jnp.float32, -b2, b2)
    return dict(conv_w=conv_w, conv_b=conv_b, alpha=1.0,
                fc1_w=fc1_w, fc1_b=fc1_b, fc2_w=fc2_w, fc2_b=fc2_b)


def prepare_pallas_params(params, Hp, Wp):
    """One-time: permute fc1 rows NCHW->NHWC flatten order and cast to bf16
    (so the Pallas path needs no inter-kernel transpose and halves fc1 HBM bytes)."""
    Cout = params["conv_w"].shape[-1]
    fc1 = params["fc1_w"].reshape(Cout, Hp, Wp, -1)
    fc1 = jnp.transpose(fc1, (1, 2, 0, 3)).reshape(Hp * Wp * Cout, -1)
    p = dict(params)
    p["fc1_w_nhwc"] = fc1.astype(jnp.bfloat16)
    return p


def reference_forward(x_nchw, params):
    """Pure-JAX f32 reference following the PyTorch module semantics."""
    x = jnp.transpose(x_nchw, (0, 2, 3, 1))
    w = params["conv_w"]
    dn = ("NHWC", "HWIO", "NHWC")
    push = jax.lax.conv_general_dilated(x, w, (1, 1), "SAME",
                                        dimension_numbers=dn) + params["conv_b"]
    pull = jax.lax.conv_general_dilated(x, -w, (1, 1), "SAME",
                                        dimension_numbers=dn)
    pull = jax.lax.reduce_window(pull, 0.0, jax.lax.add,
                                 (1, 3, 3, 1), (1, 1, 1, 1), "SAME") / 9.0
    y = jnp.maximum(push, 0.0) - params["alpha"] * jnp.maximum(pull, 0.0)
    y = jnp.maximum(y, 0.0)
    y = jax.lax.reduce_window(y, -jnp.inf, jax.lax.max,
                              (1, 2, 2, 1), (1, 2, 2, 1), "VALID")
    flat = jnp.transpose(y, (0, 3, 1, 2)).reshape(y.shape[0], -1)   # torch flatten
    h = jnp.maximum(flat @ params["fc1_w"] + params["fc1_b"], 0.0)
    return h @ params["fc2_w"] + params["fc2_b"]


if __name__ == "__main__":
    key = jax.random.PRNGKey(0)
    kx, kp = jax.random.split(key)
    N, C, H, W = 2, 3, 16, 16          # scaled-down stand-in for (N, 3, 224, 224)
    x = jax.random.normal(kx, (N, C, H, W), jnp.float32)

    params = init_params(kp, H, W, num_classes=3)
    pparams = prepare_pallas_params(params, H // 2, W // 2)

    out = meat_classifier_forward(x, pparams)
    out = jax.block_until_ready(out)

    ref = reference_forward(x, params)
    assert out.shape == (N, 3)
    # bf16 patches / weights / activations vs f32 reference -> loose tolerance
    np.testing.assert_allclose(np.asarray(out), np.asarray(ref),
                               rtol=3e-2, atol=2e-2)
    print("KERNEL_OK")
</pallas_src>

<mosaic_0001>
module attributes {stable_mosaic.version = 11 : i64} {
  func.func @_pushpull_pool_kernel(%arg0: i32, %arg1: i32, %arg2: memref<1x1x18x16x27xbf16, #tpu.memory_space<vmem>>, %arg3: memref<27x64xbf16, #tpu.memory_space<vmem>>, %arg4: memref<1x64xf32, #tpu.memory_space<vmem>>, %arg5: memref<1x1x64x64xbf16, #tpu.memory_space<vmem>>) attributes {dimension_semantics = [#tpu.dimension_semantics<parallel>, #tpu.dimension_semantics<parallel>], iteration_bounds = array<i64: 2, 1>, scalar_prefetch = 0 : i64, scratch_operands = 0 : i64, tpu.core_type = #tpu.core_type<tc>, window_params = [{transform_indices = @transform_0, window_bounds = array<i64: 1, 1, 18, 16, 27>}, {pipeline_mode = #tpu.pipeline_mode<synchronous>, transform_indices = @transform_1, window_bounds = array<i64: 27, 64>}, {pipeline_mode = #tpu.pipeline_mode<synchronous>, transform_indices = @transform_2, window_bounds = array<i64: 1, 64>}, {transform_indices = @transform_3, window_bounds = array<i64: 1, 1, 64, 64>}]} {
    %c0 = arith.constant 0 : index
    %c0_0 = arith.constant 0 : index
    %c0_1 = arith.constant 0 : index
    %c0_2 = arith.constant 0 : index
    %c0_3 = arith.constant 0 : index
    %0 = vector.load %arg2[%c0, %c0_0, %c0_1, %c0_2, %c0_3] : memref<1x1x18x16x27xbf16, #tpu.memory_space<vmem>>, vector<1x1x18x16x27xbf16>
    %1 = vector.shape_cast %0 : vector<1x1x18x16x27xbf16> to vector<18x16x27xbf16>
    %2 = vector.shape_cast %1 : vector<18x16x27xbf16> to vector<288x27xbf16>
    %c0_4 = arith.constant 0 : index
    %c0_5 = arith.constant 0 : index
    %3 = vector.load %arg3[%c0_4, %c0_5] : memref<27x64xbf16, #tpu.memory_space<vmem>>, vector<27x64xbf16>
    %cst = arith.constant dense<0.000000e+00> : vector<288x64xf32>
    %4 = tpu.matmul %2, %3, %cst {dimension_numbers = #tpu.dot_dimension_numbers<[1], [0], [0], [1], [0, 0, 1, 1], [], []>} : vector<288x27xbf16>, vector<27x64xbf16>, vector<288x64xf32> -> vector<288x64xf32>
    %5 = vector.shape_cast %4 : vector<288x64xf32> to vector<18x16x64xf32>
    %6 = vector.extract_strided_slice %5 {offsets = [1, 0, 0], sizes = [16, 16, 64], strides = [1, 1, 1]} : vector<18x16x64xf32> to vector<16x16x64xf32>
    %c0_6 = arith.constant 0 : index
    %c0_7 = arith.constant 0 : index
    %7 = vector.load %arg4[%c0_6, %c0_7] : memref<1x64xf32, #tpu.memory_space<vmem>>, vector<1x64xf32>
    %8 = vector.shape_cast %7 : vector<1x64xf32> to vector<1x1x64xf32>
    %9 = vector.broadcast %8 : vector<1x1x64xf32> to vector<16x16x64xf32>
    %10 = arith.addf %6, %9 : vector<16x16x64xf32>
    %cst_8 = arith.constant 0.000000e+00 : f32
    %11 = vector.broadcast %cst_8 : f32 to vector<18x16x64xf32>
    %12 = arith.subf %11, %5 : vector<18x16x64xf32>
    %13 = vector.extract_strided_slice %12 {offsets = [0, 0, 0], sizes = [16, 16, 64], strides = [1, 1, 1]} : vector<18x16x64xf32> to vector<16x16x64xf32>
    %14 = vector.extract_strided_slice %12 {offsets = [1, 0, 0], sizes = [16, 16, 64], strides = [1, 1, 1]} : vector<18x16x64xf32> to vector<16x16x64xf32>
    %15 = arith.addf %13, %14 : vector<16x16x64xf32>
    %16 = vector.extract_strided_slice %12 {offsets = [2, 0, 0], sizes = [16, 16, 64], strides = [1, 1, 1]} : vector<18x16x64xf32> to vector<16x16x64xf32>
    %17 = arith.addf %15, %16 : vector<16x16x64xf32>
    %18 = vector.shape_cast %17 : vector<16x16x64xf32> to vector<256x64xf32>
    %c1_i32 = arith.constant 1 : i32
    %19 = tpu.dynamic_rotate %18 by %c1_i32 dim 0 : vector<256x64xf32>, i32 -> vector<256x64xf32>
    %20 = vector.shape_cast %19 : vector<256x64xf32> to vector<16x16x64xf32>
    %c255_i32 = arith.constant 255 : i32
    %21 = tpu.dynamic_rotate %18 by %c255_i32 dim 0 : vector<256x64xf32>, i32 -> vector<256x64xf32>
    %22 = vector.shape_cast %21 : vector<256x64xf32> to vector<16x16x64xf32>
    %23 = tpu.iota {dimensions = array<i32: 1>} : vector<16x16x64xi32>
    %c0_i32 = arith.constant 0 : i32
    %24 = vector.broadcast %c0_i32 : i32 to vector<16x16x64xi32>
    %25 = arith.cmpi eq, %23, %24 : vector<16x16x64xi32>
    %cst_9 = arith.constant 0.000000e+00 : f32
    %26 = vector.broadcast %cst_9 : f32 to vector<16x16x64xf32>
    %27 = arith.select %25, %26, %20 : vector<16x16x64xi1>, vector<16x16x64xf32>
    %c15_i32 = arith.constant 15 : i32
    %28 = vector.broadcast %c15_i32 : i32 to vector<16x16x64xi32>
    %29 = arith.cmpi eq, %23, %28 : vector<16x16x64xi32>
    %cst_10 = arith.constant 0.000000e+00 : f32
    %30 = vector.broadcast %cst_10 : f32 to vector<16x16x64xf32>
    %31 = arith.select %29, %30, %22 : vector<16x16x64xi1>, vector<16x16x64xf32>
    %32 = arith.addf %27, %17 : vector<16x16x64xf32>
    %33 = arith.addf %32, %31 : vector<16x16x64xf32>
    %cst_11 = arith.constant 0.111111112 : f32
    %34 = vector.broadcast %cst_11 : f32 to vector<16x16x64xf32>
    %35 = arith.mulf %33, %34 : vector<16x16x64xf32>
    %cst_12 = arith.constant 0.000000e+00 : f32
    %36 = vector.broadcast %cst_12 : f32 to vector<16x16x64xf32>
    %37 = arith.maximumf %10, %36 : vector<16x16x64xf32>
    %cst_13 = arith.constant 0.000000e+00 : f32
    %38 = vector.broadcast %cst_13 : f32 to vector<16x16x64xf32>
    %39 = arith.maximumf %35, %38 : vector<16x16x64xf32>
    %cst_14 = arith.constant 1.000000e+00 : f32
    %40 = vector.broadcast %cst_14 : f32 to vector<16x16x64xf32>
    %41 = arith.mulf %40, %39 : vector<16x16x64xf32>
    %42 = arith.subf %37, %41 : vector<16x16x64xf32>
    %cst_15 = arith.constant 0.000000e+00 : f32
    %43 = vector.broadcast %cst_15 : f32 to vector<16x16x64xf32>
    %44 = arith.maximumf %42, %43 : vector<16x16x64xf32>
    %45 = vector.shape_cast %44 : vector<16x16x64xf32> to vector<8x2x8x2x64xf32>
    %46 = vector.extract_strided_slice %45 {offsets = [0, 0, 0, 0, 0], sizes = [8, 1, 8, 2, 64], strides = [1, 1, 1, 1, 1]} : vector<8x2x8x2x64xf32> to vector<8x1x8x2x64xf32>
    %47 = vector.shape_cast %46 : vector<8x1x8x2x64xf32> to vector<8x8x2x64xf32>
    %48 = vector.extract_strided_slice %45 {offsets = [0, 1, 0, 0, 0], sizes = [8, 1, 8, 2, 64], strides = [1, 1, 1, 1, 1]} : vector<8x2x8x2x64xf32> to vector<8x1x8x2x64xf32>
    %49 = vector.shape_cast %48 : vector<8x1x8x2x64xf32> to vector<8x8x2x64xf32>
    %50 = arith.maximumf %47, %49 : vector<8x8x2x64xf32>
    %51 = vector.extract_strided_slice %50 {offsets = [0, 0, 0, 0], sizes = [8, 8, 1, 64], strides = [1, 1, 1, 1]} : vector<8x8x2x64xf32> to vector<8x8x1x64xf32>
    %52 = vector.shape_cast %51 : vector<8x8x1x64xf32> to vector<8x8x64xf32>
    %53 = vector.extract_strided_slice %50 {offsets = [0, 0, 1, 0], sizes = [8, 8, 1, 64], strides = [1, 1, 1, 1]} : vector<8x8x2x64xf32> to vector<8x8x1x64xf32>
    %54 = vector.shape_cast %53 : vector<8x8x1x64xf32> to vector<8x8x64xf32>
    %55 = arith.maximumf %52, %54 : vector<8x8x64xf32>
    %56 = vector.shape_cast %55 : vector<8x8x64xf32> to vector<64x64xf32>
    %57 = arith.truncf %56 : vector<64x64xf32> to vector<64x64xbf16>
    %c0_16 = arith.constant 0 : index
    %c0_17 = arith.constant 0 : index
    %c0_18 = arith.constant 0 : index
    %c0_19 = arith.constant 0 : index
    %58 = vector.load %arg5[%c0_16, %c0_17, %c0_18, %c0_19] : memref<1x1x64x64xbf16, #tpu.memory_space<vmem>>, vector<1x1x64x64xbf16>
    %59 = vector.shape_cast %58 : vector<1x1x64x64xbf16> to vector<64x64xbf16>
    %60 = vector.shape_cast %57 : vector<64x64xbf16> to vector<1x1x64x64xbf16>
    tpu.vector_store %arg5[%c0_16, %c0_17, %c0_18, %c0_19], %60 {strides = array<i32>} : memref<1x1x64x64xbf16, #tpu.memory_space<vmem>>, vector<1x1x64x64xbf16>,
    return
  }
  func.func @transform_0(%arg0: i32, %arg1: i32) -> (i32, i32, i32, i32, i32) {
    %c0_i32 = arith.constant 0 : i32
    %c0_i32_0 = arith.constant 0 : i32
    %c0_i32_1 = arith.constant 0 : i32
    %c0_i32_2 = arith.constant 0 : i32
    return %arg0, %arg1, %c0_i32, %c0_i32_0, %c0_i32_1 : i32, i32, i32, i32, i32
  }
  func.func @transform_1(%arg0: i32, %arg1: i32) -> (i32, i32) {
    %c0_i32 = arith.constant 0 : i32
    %c0_i32_0 = arith.constant 0 : i32
    %c0_i32_1 = arith.constant 0 : i32
    return %c0_i32, %c0_i32_0 : i32, i32
  }
  func.func @transform_2(%arg0: i32, %arg1: i32) -> (i32, i32) {
    %c0_i32 = arith.constant 0 : i32
    %c0_i32_0 = arith.constant 0 : i32
    %c0_i32_1 = arith.constant 0 : i32
    return %c0_i32, %c0_i32_0 : i32, i32
  }
  func.func @transform_3(%arg0: i32, %arg1: i32) -> (i32, i32, i32, i32) {
    %c0_i32 = arith.constant 0 : i32
    %c0_i32_0 = arith.constant 0 : i32
    %c0_i32_1 = arith.constant 0 : i32
    return %arg0, %arg1, %c0_i32, %c0_i32_0 : i32, i32, i32, i32
  }
}

</mosaic_0001>

<llo_original>
// kernel: tpu_custom_call.1
$region0: #{tpu_custom_call.1}
  #allocation0 [shape = 'u32[]', space=smem, size = 0x4, offset = 0x4, fixed_abs, tag = 'smem constant byte address 0x4 - core index']
  #allocation1 [shape = 'u32[72,128]{1,0:T(1,128)}', space=vmem, size = 0x9000, scoped, tag = 'internal scratch']
  %s0 = inlined_call_operand.hbm [shape: bf16[2,1,18,16,27], index: 0, kind: input, shape index: {}]
  %s1 = inlined_call_operand.hbm [shape: bf16[27,64], index: 1, kind: input, shape index: {}]
  %s2 = inlined_call_operand.vmem [shape: f32[1,64], index: 2, kind: input, shape index: {}]
  %s3 = inlined_call_operand.hbm [shape: bf16[2,1,64,64], index: 3, kind: output, shape index: {}]
  %s4 = sld [smem:[#allocation0]]
  $region53: #{tpu_custom_call.1} parent=0
    _
  %s6 = ssub.s32 1, %s4
  %s7 = scalar_select 0, %s6, %s4
  $region1: #{tpu_custom_call.1} parent=0
    #allocation2 [shape = 'u8[147456]{0}', space=vmem, size = 0x24000, scoped, tag = 'input window, operand 0']
    #allocation3 [shape = 's32[2]{0}', space=sflag, size = 0x8, scoped, tag = 'scoped memory for tpu_custom_call.1']
    #allocation4 [shape = 's32[2]{0}', space=sflag, size = 0x8, scoped, tag = 'scoped memory for tpu_custom_call.1']
    #allocation5 [shape = 'u8[8192]{0}', space=vmem, size = 0x2000, scoped, tag = 'input window, operand 1, single buffered']
    #allocation6 [shape = 's32[1]{0}', space=sflag, size = 0x4, scoped, tag = 'scoped memory for tpu_custom_call.1']
    #allocation7 [shape = 'u8[32768]{0}', space=vmem, size = 0x8000, scoped, tag = 'output window, operand 0']
    %8 = vsyncpa [#allocation3], 0
    %s9 = scalar_lea.sflag [#allocation3], 1
    %10 = vsyncpa %s9, 0
    %11 = vsyncpa [#allocation6], 0
    %12 = vsyncpa [#allocation4], 0
    %s13 = scalar_lea.sflag [#allocation4], 1
    %14 = vsyncpa %s13, 0
    loop: start=0, step=1, limit=4
    $region2: #{tpu_custom_call.1} parent=1 // loop_pre_header
      _
    $region3: #{tpu_custom_call.1} parent=1 // loop_header
      %s16 = sphi 0, %s20
      %p17 = scmp.ge.s32.totalorder %s16, 4
      %s23 = sphi 0, %s35
      %s24 = sphi 0, %s31
      %s25 = sphi 0, %s23
      %s26 = sphi 0, %s24
      %s27 = sphi 0, %s25
      %s28 = sphi 0, %s26
      %s40 = sphi 0, %s42
      %s43 = sphi 0, %s40
      %s44 = sphi 0, %s43
      %s60 = sphi 0, %s44
      %s64 = sphi 0, %s64
      %s66 = sphi 0, %s64
      %s67 = sphi 0, %s66
      %s81 = sphi 0, %s67
      %s85 = sphi 0, %s85
      %s87 = sphi 0, %s85
      %s88 = sphi 0, %s87
      %s102 = sphi 0, %s88
      %s110 = sphi 0, %s112
      %s113 = sphi 0, %s110
      %s114 = sphi 0, %s113
      %s130 = sphi 0, %s114
    $region4: #{tpu_custom_call.1} parent=1 // loop_header_branch
      %19 = sbr.rel (%p17) target = $region8
    $region5: #{tpu_custom_call.1} parent=1 // loop_body
      %s21 = ssub.s32 %s16, 1
      %s22 = ssub.s32 %s16, 2
      %s29 = sadd.s32 1, %s24
      %p30 = scmp.ge.s32.totalorder %s29, 1
      %s31 = scalar_select %p30, 0, %s29
      %s32 = sadd.s32 1, %s23
      %s33 = scalar_select %p30, %s32, %s23
      %p34 = scmp.ge.s32.totalorder %s33, 2
      %s35 = scalar_select %p34, 0, %s33
      %s36 = ssub.s32 %s23, %s35
      %s37 = ssub.s32 %s24, %s31
      %s38 = sor.u32 %s36, %s37
      %p39 = scmp.eq.s32.totalorder %s38, 0
      %s41 = sadd.s32 %s40, 1
      %s42 = scalar_select %p39, %s40, %s41
      %p45 = pneg %p39
      %p46 = scmp.eq.s32.totalorder %s16, 1
      %p47 = por %p45, %p46
      %p48 = scmp.ne.s32.totalorder %s40, %s43
      %p49 = scmp.eq.s32.totalorder %s16, 0
      %p50 = por %p48, %p49
      %p51 = scmp.ne.s32.totalorder %s40, %s43
      %p52 = scmp.eq.s32.totalorder %s21, 1
      %p53 = por %p51, %p52
      %p54 = scmp.ne.s32.totalorder %s43, %s44
      %p55 = scmp.eq.s32.totalorder %s21, 0
      %p56 = por %p54, %p55
      %p57 = scmp.ne.s32.totalorder %s43, %s44
      %p58 = scmp.eq.s32.totalorder %s22, 1
      %p59 = por %p57, %p58
      %p61 = scmp.ne.s32.totalorder %s44, %s60
      %p62 = scmp.eq.s32.totalorder %s22, 0
      %p63 = por %p61, %p62
      %s65 = sadd.s32 %s64, 1
      %p68 = scmp.eq.s32.totalorder %s16, 1
      %p69 = scmp.ne.s32.totalorder %s64, %s66
      %p70 = scmp.eq.s32.totalorder %s16, 0
      %p71 = por %p69, %p70
      %p72 = scmp.ne.s32.totalorder %s64, %s66
      %p73 = scmp.eq.s32.totalorder %s21, 1
      %p74 = por %p72, %p73
      %p75 = scmp.ne.s32.totalorder %s66, %s67
      %p76 = scmp.eq.s32.totalorder %s21, 0
      %p77 = por %p75, %p76
      %p78 = scmp.ne.s32.totalorder %s66, %s67
      %p79 = scmp.eq.s32.totalorder %s22, 1
      %p80 = por %p78, %p79
      %p82 = scmp.ne.s32.totalorder %s67, %s81
      %p83 = scmp.eq.s32.totalorder %s22, 0
      %p84 = por %p82, %p83
      %s86 = sadd.s32 %s85, 1
      %p89 = scmp.eq.s32.totalorder %s16, 1
      %p90 = scmp.ne.s32.totalorder %s85, %s87
      %p91 = scmp.eq.s32.totalorder %s16, 0
      %p92 = por %p90, %p91
      %p93 = scmp.ne.s32.totalorder %s85, %s87
      %p94 = scmp.eq.s32.totalorder %s21, 1
      %p95 = por %p93, %p94
      %p96 = scmp.ne.s32.totalorder %s87, %s88
      %p97 = scmp.eq.s32.totalorder %s21, 0
      %p98 = por %p96, %p97
      %p99 = scmp.ne.s32.totalorder %s87, %s88
      %p100 = scmp.eq.s32.totalorder %s22, 1
      %p101 = por %p99, %p100
      %p103 = scmp.ne.s32.totalorder %s88, %s102
      %p104 = scmp.eq.s32.totalorder %s22, 0
      %p105 = por %p103, %p104
      %s106 = ssub.s32 %s23, %s35
      %s107 = ssub.s32 %s24, %s31
      %s108 = sor.u32 %s106, %s107
      %p109 = scmp.eq.s32.totalorder %s108, 0
      %s111 = sadd.s32 %s110, 1
      %s112 = scalar_select %p109, %s110, %s111
      %p115 = pneg %p109
      %p116 = scmp.eq.s32.totalorder %s16, 1
      %p117 = por %p115, %p116
      %p118 = scmp.ne.s32.totalorder %s110, %s113
      %p119 = scmp.eq.s32.totalorder %s16, 0
      %p120 = por %p118, %p119
      %p121 = scmp.ne.s32.totalorder %s110, %s113
      %p122 = scmp.eq.s32.totalorder %s21, 1
      %p123 = por %p121, %p122
      %p124 = scmp.ne.s32.totalorder %s113, %s114
      %p125 = scmp.eq.s32.totalorder %s21, 0
      %p126 = por %p124, %p125
      %p127 = scmp.ne.s32.totalorder %s113, %s114
      %p128 = scmp.eq.s32.totalorder %s22, 1
      %p129 = por %p127, %p128
      %p131 = scmp.ne.s32.totalorder %s114, %s130
      %p132 = scmp.eq.s32.totalorder %s22, 0
      %p133 = por %p131, %p132
      %p134 = scmp.le.s32.totalorder 1, %s16
      %p135 = scmp.lt.s32.totalorder %s16, 3
      %p136 = pnand %p134, %p135
      %p137 = pneg %p136
      // Predicated region
      $region9: #{tpu_custom_call.1} parent=5 // pred_check
        _
      $region10: #{tpu_custom_call.1} parent=5 // pred_check_branch
        %139 = sbr.rel (%p136) target = $region12
      $region11: #{tpu_custom_call.1} parent=5 // pred_region
        %s140 = ssub.s32 %s16, 1
        // Predicated region
        $region13: #{tpu_custom_call.1} parent=11 // pred_check
          %p141 = pneg %p77
        $region14: #{tpu_custom_call.1} parent=11 // pred_check_branch
          %143 = sbr.rel (%p141) target = $region16
        $region15: #{tpu_custom_call.1} parent=11 // pred_region
          %145 = vsyncadd [#allocation6], 0
          %s146 = sshll.u32 %s1, 4
          %s147 = int_to_ptr.hbm [resolvable:$true] %s146
          %s148 = sshll.u32 [#allocation5], 4
          %s149 = int_to_ptr.vmem [resolvable:$true] %s148
          %154 = dma.hbm_to_vmem [thread:$0]  %s147, 256, %s149, [#allocation6], 64, 64, 4
        $region16: #{tpu_custom_call.1} parent=11 // pred_fallthru
          _
        // Predicated region
        $region17: #{tpu_custom_call.1} parent=11 // pred_check
          %p155 = pneg %p98
        $region18: #{tpu_custom_call.1} parent=11 // pred_check_branch
          %157 = sbr.rel (%p155) target = $region20
        $region19: #{tpu_custom_call.1} parent=11 // pred_region
          _
        $region20: #{tpu_custom_call.1} parent=11 // pred_fallthru
          _
      $region12: #{tpu_custom_call.1} parent=5 // pred_fallthru
        _
      %p158 = scmp.lt.s32.totalorder %s16, 2
      // Predicated region
      $region21: #{tpu_custom_call.1} parent=5 // pred_check
        %p159 = pneg %p158
      $region22: #{tpu_custom_call.1} parent=5 // pred_check_branch
        %161 = sbr.rel (%p159) target = $region24
      $region23: #{tpu_custom_call.1} parent=5 // pred_region
        // Predicated region
        $region25: #{tpu_custom_call.1} parent=23 // pred_check
          %p162 = pneg %p50
        $region26: #{tpu_custom_call.1} parent=23 // pred_check_branch
          %164 = sbr.rel (%p162) target = $region28
        $region27: #{tpu_custom_call.1} parent=23 // pred_region
          %s165 = sand.u32 %s40, 1
          %s166 = scalar_lea.sflag [#allocation3], %s165
          %s167 = sand.u32 %s40, 1
          %s168 = smul.addr %s167, 144
          %s169 = scalar_lea.vmem [#allocation2], %s168
          %171 = vsyncadd %s166, 0
          %s172 = smul.addr %s24, 36
          %s173 = smul.addr %s23, 36
          %s174 = sadd.s32 %s172, %s173
          %s175 = smul.addr %s174, 4
          %s176 = scalar_lea.hbm %s0, %s175
          %s177 = sshll.u32 %s176, 4
          %s178 = int_to_ptr.hbm [resolvable:$true] %s177
          %s179 = sshll.u32 %s169, 4
          %s180 = int_to_ptr.vmem [resolvable:$true] %s179
          %185 = dma.hbm_to_vmem [thread:$0]  %s178, 2304, %s180, %s166, 64, 64, 4
        $region28: #{tpu_custom_call.1} parent=23 // pred_fallthru
          _
      $region24: #{tpu_custom_call.1} parent=5 // pred_fallthru
        _
      %p186 = scmp.le.s32.totalorder 1, %s16
      %p187 = scmp.lt.s32.totalorder %s16, 3
      %p188 = pnand %p186, %p187
      %p189 = pneg %p188
      // Predicated region
      $region29: #{tpu_custom_call.1} parent=5 // pred_check
        _
      $region30: #{tpu_custom_call.1} parent=5 // pred_check_branch
        %191 = sbr.rel (%p188) target = $region32
      $region31: #{tpu_custom_call.1} parent=5 // pred_region
        %s192 = ssub.s32 %s16, 1
        %s193 = sand.u32 %s43, 1
        %s194 = scalar_lea.sflag [#allocation3], %s193
        %s195 = sand.u32 %s43, 1
        %s196 = smul.addr %s195, 144
        %s197 = scalar_lea.vmem [#allocation2], %s196
        // Predicated region
        $region33: #{tpu_custom_call.1} parent=31 // pred_check
          %p198 = pneg %p56
        $region34: #{tpu_custom_call.1} parent=31 // pred_check_branch
          %200 = sbr.rel (%p198) target = $region36
        $region35: #{tpu_custom_call.1} parent=31 // pred_region
          %202 = dma.done %s194, 2304
        $region36: #{tpu_custom_call.1} parent=31 // pred_fallthru
          _
        // Predicated region
        $region37: #{tpu_custom_call.1} parent=31 // pred_check
          %p203 = pneg %p77
        $region38: #{tpu_custom_call.1} parent=31 // pred_check_branch
          %205 = sbr.rel (%p203) target = $region40
        $region39: #{tpu_custom_call.1} parent=31 // pred_region
          %207 = dma.done [#allocation6], 256
        $region40: #{tpu_custom_call.1} parent=31 // pred_fallthru
          _
        %s208 = sand.u32 %s43, 1
        %s209 = scalar_lea.sflag [#allocation3], %s208
        %s210 = sand.u32 %s43, 1
        %s211 = smul.addr %s210, 144
        %s212 = scalar_lea.vmem [#allocation2], %s211
        %p213 = pneg %p56
        %p214 = pneg %p53
        %p215 = pneg %p77
        %p216 = pneg %p74
        %p217 = pneg %p98
        %p218 = pneg %p95
        %p219 = pneg %p126
        %p220 = pneg %p123
        %s221 = sand.u32 %s113, 1
        %s222 = scalar_lea.sflag [#allocation4], %s221
        %s223 = sand.u32 %s113, 1
        %s224 = smul.addr %s223, 32
        %s225 = scalar_lea.vmem [#allocation7], %s224
        %v227 = vld [vmem:[%s197] sm:$0xf]
        %v228 = vld [vmem:[%s197 + $0x4] sm:$0xf]
        %v229 = vld [vmem:[%s197 + $0x8] sm:$0xf]
        %v230 = vld [vmem:[%s197 + $0xc] sm:$0xf]
        %v231 = vld [vmem:[%s197 + $0x10] sm:$0xf]
        %v232 = vld [vmem:[%s197 + $0x14] sm:$0xf]
        %v233 = vld [vmem:[%s197 + $0x18] sm:$0xf]
        %v234 = vld [vmem:[%s197 + $0x1c] sm:$0xf]
        %v235 = vld [vmem:[%s197 + $0x20] sm:$0xf]
        %v236 = vld [vmem:[%s197 + $0x24] sm:$0xf]
        %v237 = vld [vmem:[%s197 + $0x28] sm:$0xf]
        %v238 = vld [vmem:[%s197 + $0x2c] sm:$0xf]
        %v239 = vld [vmem:[%s197 + $0x30] sm:$0xf]
        %v240 = vld [vmem:[%s197 + $0x34] sm:$0xf]
        %v241 = vld [vmem:[%s197 + $0x38] sm:$0xf]
        %v242 = vld [vmem:[%s197 + $0x3c] sm:$0xf]
        %v243 = vld [vmem:[%s197 + $0x40] sm:$0xf]
        %v244 = vld [vmem:[%s197 + $0x44] sm:$0xf]
        %v245 = vld [vmem:[%s197 + $0x48] sm:$0xf]
        %v246 = vld [vmem:[%s197 + $0x4c] sm:$0xf]
        %v247 = vld [vmem:[%s197 + $0x50] sm:$0xf]
        %v248 = vld [vmem:[%s197 + $0x54] sm:$0xf]
        %v249 = vld [vmem:[%s197 + $0x58] sm:$0xf]
        %v250 = vld [vmem:[%s197 + $0x5c] sm:$0xf]
        %v251 = vld [vmem:[%s197 + $0x60] sm:$0xf]
        %v252 = vld [vmem:[%s197 + $0x64] sm:$0xf]
        %v253 = vld [vmem:[%s197 + $0x68] sm:$0xf]
        %v254 = vld [vmem:[%s197 + $0x6c] sm:$0xf]
        %v255 = vld [vmem:[%s197 + $0x70] sm:$0xf]
        %v256 = vld [vmem:[%s197 + $0x74] sm:$0xf]
        %v257 = vld [vmem:[%s197 + $0x78] sm:$0xf]
        %v258 = vld [vmem:[%s197 + $0x7c] sm:$0xf]
        %v259 = vld [vmem:[%s197 + $0x80] sm:$0xf]
        %v260 = vld [vmem:[%s197 + $0x84] sm:$0xf]
        %v261 = vld [vmem:[%s197 + $0x88] sm:$0xf]
        %v262 = vld [vmem:[%s197 + $0x8c] sm:$0xf]
        %v263 = vld [vmem:[#allocation5] sm:$0xf]
        %v264 = vld [vmem:[#allocation5 + $0x4] sm:$0xf]
        %v265 = vld [vmem:[#allocation5 + $0x8] sm:$0xf]
        %v266 = vld [vmem:[#allocation5 + $0xc] sm:$0x3]
        %v303 = vunpack.c.l.b16 %v227
        %v304 = vunpack.c.l.b16 %v228
        %v305 = vunpack.c.l.b16 %v229
        %v306 = vunpack.c.l.b16 %v230
        %v307 = vunpack.c.l.b16 %v231
        %v308 = vunpack.c.l.b16 %v232
        %v309 = vunpack.c.l.b16 %v233
        %v310 = vunpack.c.l.b16 %v234
        %v311 = vunpack.c.l.b16 %v235
        %v312 = vunpack.c.l.b16 %v236
        %v313 = vunpack.c.l.b16 %v237
        %v314 = vunpack.c.l.b16 %v238
        %v315 = vunpack.c.l.b16 %v239
        %v316 = vunpack.c.l.b16 %v240
        %v317 = vunpack.c.l.b16 %v241
        %v318 = vunpack.c.l.b16 %v242
        %v319 = vunpack.c.l.b16 %v243
        %v320 = vunpack.c.l.b16 %v244
        %v321 = vunpack.c.l.b16 %v245
        %v322 = vunpack.c.l.b16 %v246
        %v323 = vunpack.c.l.b16 %v247
        %v324 = vunpack.c.l.b16 %v248
        %v325 = vunpack.c.l.b16 %v249
        %v326 = vunpack.c.l.b16 %v250
        %v327 = vunpack.c.l.b16 %v251
        %v328 = vunpack.c.l.b16 %v252
        %v329 = vunpack.c.l.b16 %v253
        %v330 = vunpack.c.l.b16 %v254
        %v331 = vunpack.c.l.b16 %v255
        %v332 = vunpack.c.l.b16 %v256
        %v333 = vunpack.c.l.b16 %v257
        %v334 = vunpack.c.l.b16 %v258
        %v335 = vunpack.c.l.b16 %v259
        %v336 = vunpack.c.l.b16 %v260
        %v337 = vunpack.c.l.b16 %v261
        %v338 = vunpack.c.l.b16 %v262
        %v339 = vpack.c.b16 %v304, %v303
        %v340 = vpack.c.b16 %v306, %v305
        %v341 = vpack.c.b16 %v308, %v307
        %v342 = vpack.c.b16 %v310, %v309
        %v343 = vpack.c.b16 %v312, %v311
        %v344 = vpack.c.b16 %v314, %v313
        %v345 = vpack.c.b16 %v316, %v315
        %v346 = vpack.c.b16 %v318, %v317
        %v347 = vpack.c.b16 %v320, %v319
        %v348 = vpack.c.b16 %v322, %v321
        %v349 = vpack.c.b16 %v324, %v323
        %v350 = vpack.c.b16 %v326, %v325
        %v351 = vpack.c.b16 %v328, %v327
        %v352 = vpack.c.b16 %v330, %v329
        %v353 = vpack.c.b16 %v332, %v331
        %v354 = vpack.c.b16 %v334, %v333
        %v355 = vpack.c.b16 %v336, %v335
        %v356 = vpack.c.b16 %v338, %v337
        %v361 = vunpack.c.l.b16 %v263
        %v362 = vunpack.c.l.b16 %v264
        %v363 = vunpack.c.l.b16 %v265
        %v364 = vunpack.c.l.b16 %v266
        %v365 = vpack.c.b16 %v362, %v361
        %v366 = vpack.c.b16 %v364, %v363
        %vm368 = vcmask 220160
        %v370 = vsel %vm368, %v339, 0
        %v373 = vsel %vm368, %v340, 0
        %v376 = vsel %vm368, %v341, 0
        %v379 = vsel %vm368, %v342, 0
        %v382 = vsel %vm368, %v343, 0
        %v385 = vsel %vm368, %v344, 0
        %v388 = vsel %vm368, %v345, 0
        %v391 = vsel %vm368, %v346, 0
        %v394 = vsel %vm368, %v347, 0
        %v397 = vsel %vm368, %v348, 0
        %v400 = vsel %vm368, %v349, 0
        %v403 = vsel %vm368, %v350, 0
        %v406 = vsel %vm368, %v351, 0
        %v409 = vsel %vm368, %v352, 0
        %v412 = vsel %vm368, %v353, 0
        %v415 = vsel %vm368, %v354, 0
        %v418 = vsel %vm368, %v355, 0
        %v421 = vsel %vm368, %v356, 0
        %vm423 = vcmask 1044480
        %vm424 = vcmask 1045504
        %v425 = vsel %vm423, 4294967295, 65535
        %v426 = vsel %vm424, %v425, 0
        %v428 = vand.u32 %v366, %v426
        %430 = vmatpush.bf16.msra.mxu0 0
        %431 = vmatpush.bf16.msra.mxu0 0
        %432 = vmatpush.bf16.msra.mxu0 0
        %433 = vmatpush.bf16.msra.mxu0 0
        %434 = vmatpush.bf16.msra.mxu0 0
        %435 = vmatpush.bf16.msra.mxu0 0
        %436 = vmatpush.bf16.msra.mxu0 %v428
        %437 = vmatpush.bf16.msra.mxu0 %v365
        %438 = vmatmul.bf16.gmra.mxu0 %v370
        %v439 = vpop.f32.mrf.mxu0
        %v440 = vadd.f32 0.0, %v439
        %v441 = vpop.f32.mrf.mxu0
        %v442 = vadd.f32 0.0, %v441
        %443 = vmatmul.bf16.gmra.mxu0 %v373
        %v444 = vpop.f32.mrf.mxu0
        %v445 = vadd.f32 0.0, %v444
        %v446 = vpop.f32.mrf.mxu0
        %v447 = vadd.f32 0.0, %v446
        %448 = vmatmul.bf16.gmra.mxu0 %v376
        %v449 = vpop.f32.mrf.mxu0
        %v450 = vadd.f32 0.0, %v449
        %v451 = vpop.f32.mrf.mxu0
        %v452 = vadd.f32 0.0, %v451
        %453 = vmatmul.bf16.gmra.mxu0 %v379
        %v454 = vpop.f32.mrf.mxu0
        %v455 = vadd.f32 0.0, %v454
        %v456 = vpop.f32.mrf.mxu0
        %v457 = vadd.f32 0.0, %v456
        %458 = vmatmul.bf16.gmra.mxu0 %v382
        %v459 = vpop.f32.mrf.mxu0
        %v460 = vadd.f32 0.0, %v459
        %v461 = vpop.f32.mrf.mxu0
        %v462 = vadd.f32 0.0, %v461
        %463 = vmatmul.bf16.gmra.mxu0 %v385
        %v464 = vpop.f32.mrf.mxu0
        %v465 = vadd.f32 0.0, %v464
        %v466 = vpop.f32.mrf.mxu0
        %v467 = vadd.f32 0.0, %v466
        %468 = vmatmul.bf16.gmra.mxu0 %v388
        %v469 = vpop.f32.mrf.mxu0
        %v470 = vadd.f32 0.0, %v469
        %v471 = vpop.f32.mrf.mxu0
        %v472 = vadd.f32 0.0, %v471
        %473 = vmatmul.bf16.gmra.mxu0 %v391
        %v474 = vpop.f32.mrf.mxu0
        %v475 = vadd.f32 0.0, %v474
        %v476 = vpop.f32.mrf.mxu0
        %v477 = vadd.f32 0.0, %v476
        %478 = vmatmul.bf16.gmra.mxu0 %v394
        %v479 = vpop.f32.mrf.mxu0
        %v480 = vadd.f32 0.0, %v479
        %v481 = vpop.f32.mrf.mxu0
        %v482 = vadd.f32 0.0, %v481
        %483 = vmatmul.bf16.gmra.mxu0 %v397
        %v484 = vpop.f32.mrf.mxu0
        %v485 = vadd.f32 0.0, %v484
        %v486 = vpop.f32.mrf.mxu0
        %v487 = vadd.f32 0.0, %v486
        %488 = vmatmul.bf16.gmra.mxu0 %v400
        %v489 = vpop.f32.mrf.mxu0
        %v490 = vadd.f32 0.0, %v489
        %v491 = vpop.f32.mrf.mxu0
        %v492 = vadd.f32 0.0, %v491
        %493 = vmatmul.bf16.gmra.mxu0 %v403
        %v494 = vpop.f32.mrf.mxu0
        %v495 = vadd.f32 0.0, %v494
        %v496 = vpop.f32.mrf.mxu0
        %v497 = vadd.f32 0.0, %v496
        %498 = vmatmul.bf16.gmra.mxu0 %v406
        %v499 = vpop.f32.mrf.mxu0
        %v500 = vadd.f32 0.0, %v499
        %v501 = vpop.f32.mrf.mxu0
        %v502 = vadd.f32 0.0, %v501
        %503 = vmatmul.bf16.gmra.mxu0 %v409
        %v504 = vpop.f32.mrf.mxu0
        %v505 = vadd.f32 0.0, %v504
        %v506 = vpop.f32.mrf.mxu0
        %v507 = vadd.f32 0.0, %v506
        %508 = vmatmul.bf16.gmra.mxu0 %v412
        %v509 = vpop.f32.mrf.mxu0
        %v510 = vadd.f32 0.0, %v509
        %v511 = vpop.f32.mrf.mxu0
        %v512 = vadd.f32 0.0, %v511
        %513 = vmatmul.bf16.gmra.mxu0 %v415
        %v514 = vpop.f32.mrf.mxu0
        %v515 = vadd.f32 0.0, %v514
        %v516 = vpop.f32.mrf.mxu0
        %v517 = vadd.f32 0.0, %v516
        %518 = vmatmul.bf16.gmra.mxu0 %v418
        %v519 = vpop.f32.mrf.mxu0
        %v520 = vadd.f32 0.0, %v519
        %v521 = vpop.f32.mrf.mxu0
        %v522 = vadd.f32 0.0, %v521
        %523 = vmatmul.bf16.gmra.mxu0 %v421
        %v524 = vpop.f32.mrf.mxu0
        %v525 = vadd.f32 0.0, %v524
        %v526 = vpop.f32.mrf.mxu0
        %v527 = vadd.f32 0.0, %v526
        %528 = vdwg.mxu0
        %v529 = vld [vmem:[%s2] sm:$0x1]
        %v531 = vperm.slane %v529, 0
        %v533 = vadd.f32 %v445, %v531
        %v534 = vadd.f32 %v447, %v531
        %v535 = vadd.f32 %v450, %v531
        %v536 = vadd.f32 %v452, %v531
        %v537 = vadd.f32 %v455, %v531
        %v538 = vadd.f32 %v457, %v531
        %v539 = vadd.f32 %v460, %v531
        %v540 = vadd.f32 %v462, %v531
        %v541 = vadd.f32 %v465, %v531
        %v542 = vadd.f32 %v467, %v531
        %v543 = vadd.f32 %v470, %v531
        %v544 = vadd.f32 %v472, %v531
        %v545 = vadd.f32 %v475, %v531
        %v546 = vadd.f32 %v477, %v531
        %v547 = vadd.f32 %v480, %v531
        %v548 = vadd.f32 %v482, %v531
        %v549 = vadd.f32 %v485, %v531
        %v550 = vadd.f32 %v487, %v531
        %v551 = vadd.f32 %v490, %v531
        %v552 = vadd.f32 %v492, %v531
        %v553 = vadd.f32 %v495, %v531
        %v554 = vadd.f32 %v497, %v531
        %v555 = vadd.f32 %v500, %v531
        %v556 = vadd.f32 %v502, %v531
        %v557 = vadd.f32 %v505, %v531
        %v558 = vadd.f32 %v507, %v531
        %v559 = vadd.f32 %v510, %v531
        %v560 = vadd.f32 %v512, %v531
        %v561 = vadd.f32 %v515, %v531
        %v562 = vadd.f32 %v517, %v531
        %v563 = vadd.f32 %v520, %v531
        %v564 = vadd.f32 %v522, %v531
        %v565 = vsub.f32 0.0, %v440
        %v566 = vsub.f32 0.0, %v442
        %v567 = vsub.f32 0.0, %v445
        %v568 = vsub.f32 0.0, %v447
        %v569 = vsub.f32 0.0, %v450
        %v570 = vsub.f32 0.0, %v452
        %v571 = vsub.f32 0.0, %v455
        %v572 = vsub.f32 0.0, %v457
        %v573 = vsub.f32 0.0, %v460
        %v574 = vsub.f32 0.0, %v462
        %v575 = vsub.f32 0.0, %v465
        %v576 = vsub.f32 0.0, %v467
        %v577 = vsub.f32 0.0, %v470
        %v578 = vsub.f32 0.0, %v472
        %v579 = vsub.f32 0.0, %v475
        %v580 = vsub.f32 0.0, %v477
        %v581 = vsub.f32 0.0, %v480
        %v582 = vsub.f32 0.0, %v482
        %v583 = vsub.f32 0.0, %v485
        %v584 = vsub.f32 0.0, %v487
        %v585 = vsub.f32 0.0, %v490
        %v586 = vsub.f32 0.0, %v492
        %v587 = vsub.f32 0.0, %v495
        %v588 = vsub.f32 0.0, %v497
        %v589 = vsub.f32 0.0, %v500
        %v590 = vsub.f32 0.0, %v502
        %v591 = vsub.f32 0.0, %v505
        %v592 = vsub.f32 0.0, %v507
        %v593 = vsub.f32 0.0, %v510
        %v594 = vsub.f32 0.0, %v512
        %v595 = vsub.f32 0.0, %v515
        %v596 = vsub.f32 0.0, %v517
        %v597 = vsub.f32 0.0, %v520
        %v598 = vsub.f32 0.0, %v522
        %v599 = vsub.f32 0.0, %v525
        %v600 = vsub.f32 0.0, %v527
        %v601 = vadd.f32 %v565, %v567
        %v602 = vadd.f32 %v566, %v568
        %v603 = vadd.f32 %v567, %v569
        %v604 = vadd.f32 %v568, %v570
        %v605 = vadd.f32 %v569, %v571
        %v606 = vadd.f32 %v570, %v572
        %v607 = vadd.f32 %v571, %v573
        %v608 = vadd.f32 %v572, %v574
        %v609 = vadd.f32 %v573, %v575
        %v610 = vadd.f32 %v574, %v576
        %v611 = vadd.f32 %v575, %v577
        %v612 = vadd.f32 %v576, %v578
        %v613 = vadd.f32 %v577, %v579
        %v614 = vadd.f32 %v578, %v580
        %v615 = vadd.f32 %v579, %v581
        %v616 = vadd.f32 %v580, %v582
        %v617 = vadd.f32 %v581, %v583
        %v618 = vadd.f32 %v582, %v584
        %v619 = vadd.f32 %v583, %v585
        %v620 = vadd.f32 %v584, %v586
        %v621 = vadd.f32 %v585, %v587
        %v622 = vadd.f32 %v586, %v588
        %v623 = vadd.f32 %v587, %v589
        %v624 = vadd.f32 %v588, %v590
        %v625 = vadd.f32 %v589, %v591
        %v626 = vadd.f32 %v590, %v592
        %v627 = vadd.f32 %v591, %v593
        %v628 = vadd.f32 %v592, %v594
        %v629 = vadd.f32 %v593, %v595
        %v630 = vadd.f32 %v594, %v596
        %v631 = vadd.f32 %v595, %v597
        %v632 = vadd.f32 %v596, %v598
        %v633 = vadd.f32 %v601, %v569
        %v634 = vadd.f32 %v602, %v570
        %v635 = vadd.f32 %v603, %v571
        %v636 = vadd.f32 %v604, %v572
        %v637 = vadd.f32 %v605, %v573
        %v638 = vadd.f32 %v606, %v574
        %v639 = vadd.f32 %v607, %v575
        %v640 = vadd.f32 %v608, %v576
        %v641 = vadd.f32 %v609, %v577
        %v642 = vadd.f32 %v610, %v578
        %v643 = vadd.f32 %v611, %v579
        %v644 = vadd.f32 %v612, %v580
        %v645 = vadd.f32 %v613, %v581
        %v646 = vadd.f32 %v614, %v582
        %v647 = vadd.f32 %v615, %v583
        %v648 = vadd.f32 %v616, %v584
        %v649 = vadd.f32 %v617, %v585
        %v650 = vadd.f32 %v618, %v586
        %v651 = vadd.f32 %v619, %v587
        %v652 = vadd.f32 %v620, %v588
        %v653 = vadd.f32 %v621, %v589
        %v654 = vadd.f32 %v622, %v590
        %v655 = vadd.f32 %v623, %v591
        %v656 = vadd.f32 %v624, %v592
        %v657 = vadd.f32 %v625, %v593
        %v658 = vadd.f32 %v626, %v594
        %v659 = vadd.f32 %v627, %v595
        %v660 = vadd.f32 %v628, %v596
        %v661 = vadd.f32 %v629, %v597
        %v662 = vadd.f32 %v630, %v598
        %v663 = vadd.f32 %v631, %v599
        %v664 = vadd.f32 %v632, %v600
        %v665 = vrot.slane %v633, 7
        %v666 = vrot.slane %v634, 7
        %v667 = vrot.slane %v635, 7
        %v668 = vrot.slane %v636, 7
        %v669 = vrot.slane %v637, 7
        %v670 = vrot.slane %v638, 7
        %v671 = vrot.slane %v639, 7
        %v672 = vrot.slane %v640, 7
        %v673 = vrot.slane %v641, 7
        %v674 = vrot.slane %v642, 7
        %v675 = vrot.slane %v643, 7
        %v676 = vrot.slane %v644, 7
        %v677 = vrot.slane %v645, 7
        %v678 = vrot.slane %v646, 7
        %v679 = vrot.slane %v647, 7
        %v680 = vrot.slane %v648, 7
        %v681 = vrot.slane %v649, 7
        %v682 = vrot.slane %v650, 7
        %v683 = vrot.slane %v651, 7
        %v684 = vrot.slane %v652, 7
        %v685 = vrot.slane %v653, 7
        %v686 = vrot.slane %v654, 7
        %v687 = vrot.slane %v655, 7
        %v688 = vrot.slane %v656, 7
        %v689 = vrot.slane %v657, 7
        %v690 = vrot.slane %v658, 7
        %v691 = vrot.slane %v659, 7
        %v692 = vrot.slane %v660, 7
        %v693 = vrot.slane %v661, 7
        %v694 = vrot.slane %v662, 7
        %v695 = vrot.slane %v663, 7
        %v696 = vrot.slane %v664, 7
        %v697 = vlaneseq
        %v698 = vshrl.u32 %v697, 7
        %vm699 = vcmp.lt.s32.totalorder %v698, 1
        %v700 = vsel %vm699, %v695, %v696
        %v701 = vsel %vm699, %v694, %v695
        %v702 = vsel %vm699, %v693, %v694
        %v703 = vsel %vm699, %v692, %v693
        %v704 = vsel %vm699, %v691, %v692
        %v705 = vsel %vm699, %v690, %v691
        %v706 = vsel %vm699, %v689, %v690
        %v707 = vsel %vm699, %v688, %v689
        %v708 = vsel %vm699, %v687, %v688
        %v709 = vsel %vm699, %v686, %v687
        %v710 = vsel %vm699, %v685, %v686
        %v711 = vsel %vm699, %v684, %v685
        %v712 = vsel %vm699, %v683, %v684
        %v713 = vsel %vm699, %v682, %v683
        %v714 = vsel %vm699, %v681, %v682
        %v715 = vsel %vm699, %v680, %v681
        %v716 = vsel %vm699, %v679, %v680
        %v717 = vsel %vm699, %v678, %v679
        %v718 = vsel %vm699, %v677, %v678
        %v719 = vsel %vm699, %v676, %v677
        %v720 = vsel %vm699, %v675, %v676
        %v721 = vsel %vm699, %v674, %v675
        %v722 = vsel %vm699, %v673, %v674
        %v723 = vsel %vm699, %v672, %v673
        %v724 = vsel %vm699, %v671, %v672
        %v725 = vsel %vm699, %v670, %v671
        %v726 = vsel %vm699, %v669, %v670
        %v727 = vsel %vm699, %v668, %v669
        %v728 = vsel %vm699, %v667, %v668
        %v729 = vsel %vm699, %v666, %v667
        %v730 = vsel %vm699, %v665, %v666
        %v731 = vsel %vm699, %v696, %v665
        %v732 = vrot.slane %v633, 1
        %v733 = vrot.slane %v634, 1
        %v734 = vrot.slane %v635, 1
        %v735 = vrot.slane %v636, 1
        %v736 = vrot.slane %v637, 1
        %v737 = vrot.slane %v638, 1
        %v738 = vrot.slane %v639, 1
        %v739 = vrot.slane %v640, 1
        %v740 = vrot.slane %v641, 1
        %v741 = vrot.slane %v642, 1
        %v742 = vrot.slane %v643, 1
        %v743 = vrot.slane %v644, 1
        %v744 = vrot.slane %v645, 1
        %v745 = vrot.slane %v646, 1
        %v746 = vrot.slane %v647, 1
        %v747 = vrot.slane %v648, 1
        %v748 = vrot.slane %v649, 1
        %v749 = vrot.slane %v650, 1
        %v750 = vrot.slane %v651, 1
        %v751 = vrot.slane %v652, 1
        %v752 = vrot.slane %v653, 1
        %v753 = vrot.slane %v654, 1
        %v754 = vrot.slane %v655, 1
        %v755 = vrot.slane %v656, 1
        %v756 = vrot.slane %v657, 1
        %v757 = vrot.slane %v658, 1
        %v758 = vrot.slane %v659, 1
        %v759 = vrot.slane %v660, 1
        %v760 = vrot.slane %v661, 1
        %v761 = vrot.slane %v662, 1
        %v762 = vrot.slane %v663, 1
        %v763 = vrot.slane %v664, 1
        %vm764 = vcmp.lt.s32.totalorder %v698, 7
        %v765 = vsel %vm764, %v762, %v763
        %v766 = vsel %vm764, %v761, %v762
        %v767 = vsel %vm764, %v760, %v761
        %v768 = vsel %vm764, %v759, %v760
        %v769 = vsel %vm764, %v758, %v759
        %v770 = vsel %vm764, %v757, %v758
        %v771 = vsel %vm764, %v756, %v757
        %v772 = vsel %vm764, %v755, %v756
        %v773 = vsel %vm764, %v754, %v755
        %v774 = vsel %vm764, %v753, %v754
        %v775 = vsel %vm764, %v752, %v753
        %v776 = vsel %vm764, %v751, %v752
        %v777 = vsel %vm764, %v750, %v751
        %v778 = vsel %vm764, %v749, %v750
        %v779 = vsel %vm764, %v748, %v749
        %v780 = vsel %vm764, %v747, %v748
        %v781 = vsel %vm764, %v746, %v747
        %v782 = vsel %vm764, %v745, %v746
        %v783 = vsel %vm764, %v744, %v745
        %v784 = vsel %vm764, %v743, %v744
        %v785 = vsel %vm764, %v742, %v743
        %v786 = vsel %vm764, %v741, %v742
        %v787 = vsel %vm764, %v740, %v741
        %v788 = vsel %vm764, %v739, %v740
        %v789 = vsel %vm764, %v738, %v739
        %v790 = vsel %vm764, %v737, %v738
        %v791 = vsel %vm764, %v736, %v737
        %v792 = vsel %vm764, %v735, %v736
        %v793 = vsel %vm764, %v734, %v735
        %v794 = vsel %vm764, %v733, %v734
        %v795 = vsel %vm764, %v732, %v733
        %v796 = vsel %vm764, %v763, %v732
        %v797 = vadd.s32 %v698, 8
        %vm798 = vcmp.eq.s32.totalorder %v698, 0
        %vm799 = vcmp.eq.s32.totalorder %v797, 0
        %v800 = vsel %vm798, 0.0, %v731
        %v801 = vsel %vm799, 0.0, %v730
        %v802 = vsel %vm798, 0.0, %v729
        %v803 = vsel %vm799, 0.0, %v728
        %v804 = vsel %vm798, 0.0, %v727
        %v805 = vsel %vm799, 0.0, %v726
        %v806 = vsel %vm798, 0.0, %v725
        %v807 = vsel %vm799, 0.0, %v724
        %v808 = vsel %vm798, 0.0, %v723
        %v809 = vsel %vm799, 0.0, %v722
        %v810 = vsel %vm798, 0.0, %v721
        %v811 = vsel %vm799, 0.0, %v720
        %v812 = vsel %vm798, 0.0, %v719
        %v813 = vsel %vm799, 0.0, %v718
        %v814 = vsel %vm798, 0.0, %v717
        %v815 = vsel %vm799, 0.0, %v716
        %v816 = vsel %vm798, 0.0, %v715
        %v817 = vsel %vm799, 0.0, %v714
        %v818 = vsel %vm798, 0.0, %v713
        %v819 = vsel %vm799, 0.0, %v712
        %v820 = vsel %vm798, 0.0, %v711
        %v821 = vsel %vm799, 0.0, %v710
        %v822 = vsel %vm798, 0.0, %v709
        %v823 = vsel %vm799, 0.0, %v708
        %v824 = vsel %vm798, 0.0, %v707
        %v825 = vsel %vm799, 0.0, %v706
        %v826 = vsel %vm798, 0.0, %v705
        %v827 = vsel %vm799, 0.0, %v704
        %v828 = vsel %vm798, 0.0, %v703
        %v829 = vsel %vm799, 0.0, %v702
        %v830 = vsel %vm798, 0.0, %v701
        %v831 = vsel %vm799, 0.0, %v700
        %vm832 = vcmp.eq.s32.totalorder %v698, 15
        %vm833 = vcmp.eq.s32.totalorder %v797, 15
        %v834 = vsel %vm832, 0.0, %v795
        %v835 = vsel %vm833, 0.0, %v794
        %v836 = vsel %vm832, 0.0, %v793
        %v837 = vsel %vm833, 0.0, %v792
        %v838 = vsel %vm832, 0.0, %v791
        %v839 = vsel %vm833, 0.0, %v790
        %v840 = vsel %vm832, 0.0, %v789
        %v841 = vsel %vm833, 0.0, %v788
        %v842 = vsel %vm832, 0.0, %v787
        %v843 = vsel %vm833, 0.0, %v786
        %v844 = vsel %vm832, 0.0, %v785
        %v845 = vsel %vm833, 0.0, %v784
        %v846 = vsel %vm832, 0.0, %v783
        %v847 = vsel %vm833, 0.0, %v782
        %v848 = vsel %vm832, 0.0, %v781
        %v849 = vsel %vm833, 0.0, %v780
        %v850 = vsel %vm832, 0.0, %v779
        %v851 = vsel %vm833, 0.0, %v778
        %v852 = vsel %vm832, 0.0, %v777
        %v853 = vsel %vm833, 0.0, %v776
        %v854 = vsel %vm832, 0.0, %v775
        %v855 = vsel %vm833, 0.0, %v774
        %v856 = vsel %vm832, 0.0, %v773
        %v857 = vsel %vm833, 0.0, %v772
        %v858 = vsel %vm832, 0.0, %v771
        %v859 = vsel %vm833, 0.0, %v770
        %v860 = vsel %vm832, 0.0, %v769
        %v861 = vsel %vm833, 0.0, %v768
        %v862 = vsel %vm832, 0.0, %v767
        %v863 = vsel %vm833, 0.0, %v766
        %v864 = vsel %vm832, 0.0, %v765
        %v865 = vsel %vm833, 0.0, %v796
        %v866 = vadd.f32 %v800, %v633
        %v867 = vadd.f32 %v801, %v634
        %v868 = vadd.f32 %v802, %v635
        %v869 = vadd.f32 %v803, %v636
        %v870 = vadd.f32 %v804, %v637
        %v871 = vadd.f32 %v805, %v638
        %v872 = vadd.f32 %v806, %v639
        %v873 = vadd.f32 %v807, %v640
        %v874 = vadd.f32 %v808, %v641
        %v875 = vadd.f32 %v809, %v642
        %v876 = vadd.f32 %v810, %v643
        %v877 = vadd.f32 %v811, %v644
        %v878 = vadd.f32 %v812, %v645
        %v879 = vadd.f32 %v813, %v646
        %v880 = vadd.f32 %v814, %v647
        %v881 = vadd.f32 %v815, %v648
        %v882 = vadd.f32 %v816, %v649
        %v883 = vadd.f32 %v817, %v650
        %v884 = vadd.f32 %v818, %v651
        %v885 = vadd.f32 %v819, %v652
        %v886 = vadd.f32 %v820, %v653
        %v887 = vadd.f32 %v821, %v654
        %v888 = vadd.f32 %v822, %v655
        %v889 = vadd.f32 %v823, %v656
        %v890 = vadd.f32 %v824, %v657
        %v891 = vadd.f32 %v825, %v658
        %v892 = vadd.f32 %v826, %v659
        %v893 = vadd.f32 %v827, %v660
        %v894 = vadd.f32 %v828, %v661
        %v895 = vadd.f32 %v829, %v662
        %v896 = vadd.f32 %v830, %v663
        %v897 = vadd.f32 %v831, %v664
        %v898 = vadd.f32 %v866, %v834
        %v899 = vadd.f32 %v867, %v835
        %v900 = vadd.f32 %v868, %v836
        %v901 = vadd.f32 %v869, %v837
        %v902 = vadd.f32 %v870, %v838
        %v903 = vadd.f32 %v871, %v839
        %v904 = vadd.f32 %v872, %v840
        %v905 = vadd.f32 %v873, %v841
        %v906 = vadd.f32 %v874, %v842
        %v907 = vadd.f32 %v875, %v843
        %v908 = vadd.f32 %v876, %v844
        %v909 = vadd.f32 %v877, %v845
        %v910 = vadd.f32 %v878, %v846
        %v911 = vadd.f32 %v879, %v847
        %v912 = vadd.f32 %v880, %v848
        %v913 = vadd.f32 %v881, %v849
        %v914 = vadd.f32 %v882, %v850
        %v915 = vadd.f32 %v883, %v851
        %v916 = vadd.f32 %v884, %v852
        %v917 = vadd.f32 %v885, %v853
        %v918 = vadd.f32 %v886, %v854
        %v919 = vadd.f32 %v887, %v855
        %v920 = vadd.f32 %v888, %v856
        %v921 = vadd.f32 %v889, %v857
        %v922 = vadd.f32 %v890, %v858
        %v923 = vadd.f32 %v891, %v859
        %v924 = vadd.f32 %v892, %v860
        %v925 = vadd.f32 %v893, %v861
        %v926 = vadd.f32 %v894, %v862
        %v927 = vadd.f32 %v895, %v863
        %v928 = vadd.f32 %v896, %v864
        %v929 = vadd.f32 %v897, %v865
        %v930 = vmul.f32 %v898, 0.11111111
        %v931 = vmul.f32 %v899, 0.11111111
        %v932 = vmul.f32 %v900, 0.11111111
        %v933 = vmul.f32 %v901, 0.11111111
        %v934 = vmul.f32 %v902, 0.11111111
        %v935 = vmul.f32 %v903, 0.11111111
        %v936 = vmul.f32 %v904, 0.11111111
        %v937 = vmul.f32 %v905, 0.11111111
        %v938 = vmul.f32 %v906, 0.11111111
        %v939 = vmul.f32 %v907, 0.11111111
        %v940 = vmul.f32 %v908, 0.11111111
        %v941 = vmul.f32 %v909, 0.11111111
        %v942 = vmul.f32 %v910, 0.11111111
        %v943 = vmul.f32 %v911, 0.11111111
        %v944 = vmul.f32 %v912, 0.11111111
        %v945 = vmul.f32 %v913, 0.11111111
        %v946 = vmul.f32 %v914, 0.11111111
        %v947 = vmul.f32 %v915, 0.11111111
        %v948 = vmul.f32 %v916, 0.11111111
        %v949 = vmul.f32 %v917, 0.11111111
        %v950 = vmul.f32 %v918, 0.11111111
        %v951 = vmul.f32 %v919, 0.11111111
        %v952 = vmul.f32 %v920, 0.11111111
        %v953 = vmul.f32 %v921, 0.11111111
        %v954 = vmul.f32 %v922, 0.11111111
        %v955 = vmul.f32 %v923, 0.11111111
        %v956 = vmul.f32 %v924, 0.11111111
        %v957 = vmul.f32 %v925, 0.11111111
        %v958 = vmul.f32 %v926, 0.11111111
        %v959 = vmul.f32 %v927, 0.11111111
        %v960 = vmul.f32 %v928, 0.11111111
        %v961 = vmul.f32 %v929, 0.11111111
        %v962 = vmax.f32 %v533, 0.0
        %v963 = vmax.f32 %v534, 0.0
        %v964 = vmax.f32 %v535, 0.0
        %v965 = vmax.f32 %v536, 0.0
        %v966 = vmax.f32 %v537, 0.0
        %v967 = vmax.f32 %v538, 0.0
        %v968 = vmax.f32 %v539, 0.0
        %v969 = vmax.f32 %v540, 0.0
        %v970 = vmax.f32 %v541, 0.0
        %v971 = vmax.f32 %v542, 0.0
        %v972 = vmax.f32 %v543, 0.0
        %v973 = vmax.f32 %v544, 0.0
        %v974 = vmax.f32 %v545, 0.0
        %v975 = vmax.f32 %v546, 0.0
        %v976 = vmax.f32 %v547, 0.0
        %v977 = vmax.f32 %v548, 0.0
        %v978 = vmax.f32 %v549, 0.0
        %v979 = vmax.f32 %v550, 0.0
        %v980 = vmax.f32 %v551, 0.0
        %v981 = vmax.f32 %v552, 0.0
        %v982 = vmax.f32 %v553, 0.0
        %v983 = vmax.f32 %v554, 0.0
        %v984 = vmax.f32 %v555, 0.0
        %v985 = vmax.f32 %v556, 0.0
        %v986 = vmax.f32 %v557, 0.0
        %v987 = vmax.f32 %v558, 0.0
        %v988 = vmax.f32 %v559, 0.0
        %v989 = vmax.f32 %v560, 0.0
        %v990 = vmax.f32 %v561, 0.0
        %v991 = vmax.f32 %v562, 0.0
        %v992 = vmax.f32 %v563, 0.0
        %v993 = vmax.f32 %v564, 0.0
        %v994 = vmax.f32 %v930, 0.0
        %v995 = vmax.f32 %v931, 0.0
        %v996 = vmax.f32 %v932, 0.0
        %v997 = vmax.f32 %v933, 0.0
        %v998 = vmax.f32 %v934, 0.0
        %v999 = vmax.f32 %v935, 0.0
        %v1000 = vmax.f32 %v936, 0.0
        %v1001 = vmax.f32 %v937, 0.0
        %v1002 = vmax.f32 %v938, 0.0
        %v1003 = vmax.f32 %v939, 0.0
        %v1004 = vmax.f32 %v940, 0.0
        %v1005 = vmax.f32 %v941, 0.0
        %v1006 = vmax.f32 %v942, 0.0
        %v1007 = vmax.f32 %v943, 0.0
        %v1008 = vmax.f32 %v944, 0.0
        %v1009 = vmax.f32 %v945, 0.0
        %v1010 = vmax.f32 %v946, 0.0
        %v1011 = vmax.f32 %v947, 0.0
        %v1012 = vmax.f32 %v948, 0.0
        %v1013 = vmax.f32 %v949, 0.0
        %v1014 = vmax.f32 %v950, 0.0
        %v1015 = vmax.f32 %v951, 0.0
        %v1016 = vmax.f32 %v952, 0.0
        %v1017 = vmax.f32 %v953, 0.0
        %v1018 = vmax.f32 %v954, 0.0
        %v1019 = vmax.f32 %v955, 0.0
        %v1020 = vmax.f32 %v956, 0.0
        %v1021 = vmax.f32 %v957, 0.0
        %v1022 = vmax.f32 %v958, 0.0
        %v1023 = vmax.f32 %v959, 0.0
        %v1024 = vmax.f32 %v960, 0.0
        %v1025 = vmax.f32 %v961, 0.0
        %v1026 = vsub.f32 %v962, %v994
        %v1027 = vsub.f32 %v963, %v995
        %v1028 = vsub.f32 %v964, %v996
        %v1029 = vsub.f32 %v965, %v997
        %v1030 = vsub.f32 %v966, %v998
        %v1031 = vsub.f32 %v967, %v999
        %v1032 = vsub.f32 %v968, %v1000
        %v1033 = vsub.f32 %v969, %v1001
        %v1034 = vsub.f32 %v970, %v1002
        %v1035 = vsub.f32 %v971, %v1003
        %v1036 = vsub.f32 %v972, %v1004
        %v1037 = vsub.f32 %v973, %v1005
        %v1038 = vsub.f32 %v974, %v1006
        %v1039 = vsub.f32 %v975, %v1007
        %v1040 = vsub.f32 %v976, %v1008
        %v1041 = vsub.f32 %v977, %v1009
        %v1042 = vsub.f32 %v978, %v1010
        %v1043 = vsub.f32 %v979, %v1011
        %v1044 = vsub.f32 %v980, %v1012
        %v1045 = vsub.f32 %v981, %v1013
        %v1046 = vsub.f32 %v982, %v1014
        %v1047 = vsub.f32 %v983, %v1015
        %v1048 = vsub.f32 %v984, %v1016
        %v1049 = vsub.f32 %v985, %v1017
        %v1050 = vsub.f32 %v986, %v1018
        %v1051 = vsub.f32 %v987, %v1019
        %v1052 = vsub.f32 %v988, %v1020
        %v1053 = vsub.f32 %v989, %v1021
        %v1054 = vsub.f32 %v990, %v1022
        %v1055 = vsub.f32 %v991, %v1023
        %v1056 = vsub.f32 %v992, %v1024
        %v1057 = vsub.f32 %v993, %v1025
        %v1058 = vmax.f32 %v1026, 0.0
        %v1059 = vmax.f32 %v1027, 0.0
        %v1060 = vmax.f32 %v1028, 0.0
        %v1061 = vmax.f32 %v1029, 0.0
        %v1062 = vmax.f32 %v1030, 0.0
        %v1063 = vmax.f32 %v1031, 0.0
        %v1064 = vmax.f32 %v1032, 0.0
        %v1065 = vmax.f32 %v1033, 0.0
        %v1066 = vmax.f32 %v1034, 0.0
        %v1067 = vmax.f32 %v1035, 0.0
        %v1068 = vmax.f32 %v1036, 0.0
        %v1069 = vmax.f32 %v1037, 0.0
        %v1070 = vmax.f32 %v1038, 0.0
        %v1071 = vmax.f32 %v1039, 0.0
        %v1072 = vmax.f32 %v1040, 0.0
        %v1073 = vmax.f32 %v1041, 0.0
        %v1074 = vmax.f32 %v1042, 0.0
        %v1075 = vmax.f32 %v1043, 0.0
        %v1076 = vmax.f32 %v1044, 0.0
        %v1077 = vmax.f32 %v1045, 0.0
        %v1078 = vmax.f32 %v1046, 0.0
        %v1079 = vmax.f32 %v1047, 0.0
        %v1080 = vmax.f32 %v1048, 0.0
        %v1081 = vmax.f32 %v1049, 0.0
        %v1082 = vmax.f32 %v1050, 0.0
        %v1083 = vmax.f32 %v1051, 0.0
        %v1084 = vmax.f32 %v1052, 0.0
        %v1085 = vmax.f32 %v1053, 0.0
        %v1086 = vmax.f32 %v1054, 0.0
        %v1087 = vmax.f32 %v1055, 0.0
        %v1088 = vmax.f32 %v1056, 0.0
        %v1089 = vmax.f32 %v1057, 0.0
        %v1122 = vrot.slane %v1058, 2
        %v1123 = vrot.slane %v1058, 4
        %v1124 = vrot.slane %v1058, 6
        %v1125 = vrot.slane %v1059, 2
        %v1126 = vrot.slane %v1059, 4
        %v1127 = vrot.slane %v1059, 6
        %v1128 = vrot.slane %v1060, 2
        %v1129 = vrot.slane %v1060, 4
        %v1130 = vrot.slane %v1060, 6
        %v1131 = vrot.slane %v1061, 2
        %v1132 = vrot.slane %v1061, 4
        %v1133 = vrot.slane %v1061, 6
        %v1134 = vrot.slane %v1062, 2
        %v1135 = vrot.slane %v1062, 4
        %v1136 = vrot.slane %v1062, 6
        %v1137 = vrot.slane %v1063, 2
        %v1138 = vrot.slane %v1063, 4
        %v1139 = vrot.slane %v1063, 6
        %v1140 = vrot.slane %v1064, 2
        %v1141 = vrot.slane %v1064, 4
        %v1142 = vrot.slane %v1064, 6
        %v1143 = vrot.slane %v1065, 2
        %v1144 = vrot.slane %v1065, 4
        %v1145 = vrot.slane %v1065, 6
        %v1146 = vrot.slane %v1066, 2
        %v1147 = vrot.slane %v1066, 4
        %v1148 = vrot.slane %v1066, 6
        %v1149 = vrot.slane %v1067, 2
        %v1150 = vrot.slane %v1067, 4
        %v1151 = vrot.slane %v1067, 6
        %v1152 = vrot.slane %v1068, 2
        %v1153 = vrot.slane %v1068, 4
        %v1154 = vrot.slane %v1068, 6
        %v1155 = vrot.slane %v1069, 2
        %v1156 = vrot.slane %v1069, 4
        %v1157 = vrot.slane %v1069, 6
        %v1158 = vrot.slane %v1070, 2
        %v1159 = vrot.slane %v1070, 4
        %v1160 = vrot.slane %v1070, 6
        %v1161 = vrot.slane %v1071, 2
        %v1162 = vrot.slane %v1071, 4
        %v1163 = vrot.slane %v1071, 6
        %v1164 = vrot.slane %v1072, 2
        %v1165 = vrot.slane %v1072, 4
        %v1166 = vrot.slane %v1072, 6
        %v1167 = vrot.slane %v1073, 2
        %v1168 = vrot.slane %v1073, 4
        %v1169 = vrot.slane %v1073, 6
        %v1170 = vrot.slane %v1074, 2
        %v1171 = vrot.slane %v1074, 4
        %v1172 = vrot.slane %v1074, 6
        %v1173 = vrot.slane %v1075, 2
        %v1174 = vrot.slane %v1075, 4
        %v1175 = vrot.slane %v1075, 6
        %v1176 = vrot.slane %v1076, 2
        %v1177 = vrot.slane %v1076, 4
        %v1178 = vrot.slane %v1076, 6
        %v1179 = vrot.slane %v1077, 2
        %v1180 = vrot.slane %v1077, 4
        %v1181 = vrot.slane %v1077, 6
        %v1182 = vrot.slane %v1078, 2
        %v1183 = vrot.slane %v1078, 4
        %v1184 = vrot.slane %v1078, 6
        %v1185 = vrot.slane %v1079, 2
        %v1186 = vrot.slane %v1079, 4
        %v1187 = vrot.slane %v1079, 6
        %v1188 = vrot.slane %v1080, 2
        %v1189 = vrot.slane %v1080, 4
        %v1190 = vrot.slane %v1080, 6
        %v1191 = vrot.slane %v1081, 2
        %v1192 = vrot.slane %v1081, 4
        %v1193 = vrot.slane %v1081, 6
        %v1194 = vrot.slane %v1082, 2
        %v1195 = vrot.slane %v1082, 4
        %v1196 = vrot.slane %v1082, 6
        %v1197 = vrot.slane %v1083, 2
        %v1198 = vrot.slane %v1083, 4
        %v1199 = vrot.slane %v1083, 6
        %v1200 = vrot.slane %v1084, 2
        %v1201 = vrot.slane %v1084, 4
        %v1202 = vrot.slane %v1084, 6
        %v1203 = vrot.slane %v1085, 2
        %v1204 = vrot.slane %v1085, 4
        %v1205 = vrot.slane %v1085, 6
        %v1206 = vrot.slane %v1086, 2
        %v1207 = vrot.slane %v1086, 4
        %v1208 = vrot.slane %v1086, 6
        %v1209 = vrot.slane %v1087, 2
        %v1210 = vrot.slane %v1087, 4
        %v1211 = vrot.slane %v1087, 6
        %v1212 = vrot.slane %v1088, 2
        %v1213 = vrot.slane %v1088, 4
        %v1214 = vrot.slane %v1088, 6
        %v1215 = vrot.slane %v1089, 2
        %v1216 = vrot.slane %v1089, 4
        %v1217 = vrot.slane %v1089, 6
        %v1314 = vmax.f32 %v1058, %v1060
        %v1315 = vmax.f32 %v1122, %v1128
        %v1316 = vmax.f32 %v1123, %v1129
        %v1317 = vmax.f32 %v1124, %v1130
        %v1318 = vmax.f32 %v1059, %v1061
        %v1319 = vmax.f32 %v1125, %v1131
        %v1320 = vmax.f32 %v1126, %v1132
        %v1321 = vmax.f32 %v1127, %v1133
        %v1322 = vmax.f32 %v1062, %v1064
        %v1323 = vmax.f32 %v1134, %v1140
        %v1324 = vmax.f32 %v1135, %v1141
        %v1325 = vmax.f32 %v1136, %v1142
        %v1326 = vmax.f32 %v1063, %v1065
        %v1327 = vmax.f32 %v1137, %v1143
        %v1328 = vmax.f32 %v1138, %v1144
        %v1329 = vmax.f32 %v1139, %v1145
        %v1330 = vmax.f32 %v1066, %v1068
        %v1331 = vmax.f32 %v1146, %v1152
        %v1332 = vmax.f32 %v1147, %v1153
        %v1333 = vmax.f32 %v1148, %v1154
        %v1334 = vmax.f32 %v1067, %v1069
        %v1335 = vmax.f32 %v1149, %v1155
        %v1336 = vmax.f32 %v1150, %v1156
        %v1337 = vmax.f32 %v1151, %v1157
        %v1338 = vmax.f32 %v1070, %v1072
        %v1339 = vmax.f32 %v1158, %v1164
        %v1340 = vmax.f32 %v1159, %v1165
        %v1341 = vmax.f32 %v1160, %v1166
        %v1342 = vmax.f32 %v1071, %v1073
        %v1343 = vmax.f32 %v1161, %v1167
        %v1344 = vmax.f32 %v1162, %v1168
        %v1345 = vmax.f32 %v1163, %v1169
        %v1346 = vmax.f32 %v1074, %v1076
        %v1347 = vmax.f32 %v1170, %v1176
        %v1348 = vmax.f32 %v1171, %v1177
        %v1349 = vmax.f32 %v1172, %v1178
        %v1350 = vmax.f32 %v1075, %v1077
        %v1351 = vmax.f32 %v1173, %v1179
        %v1352 = vmax.f32 %v1174, %v1180
        %v1353 = vmax.f32 %v1175, %v1181
        %v1354 = vmax.f32 %v1078, %v1080
        %v1355 = vmax.f32 %v1182, %v1188
        %v1356 = vmax.f32 %v1183, %v1189
        %v1357 = vmax.f32 %v1184, %v1190
        %v1358 = vmax.f32 %v1079, %v1081
        %v1359 = vmax.f32 %v1185, %v1191
        %v1360 = vmax.f32 %v1186, %v1192
        %v1361 = vmax.f32 %v1187, %v1193
        %v1362 = vmax.f32 %v1082, %v1084
        %v1363 = vmax.f32 %v1194, %v1200
        %v1364 = vmax.f32 %v1195, %v1201
        %v1365 = vmax.f32 %v1196, %v1202
        %v1366 = vmax.f32 %v1083, %v1085
        %v1367 = vmax.f32 %v1197, %v1203
        %v1368 = vmax.f32 %v1198, %v1204
        %v1369 = vmax.f32 %v1199, %v1205
        %v1370 = vmax.f32 %v1086, %v1088
        %v1371 = vmax.f32 %v1206, %v1212
        %v1372 = vmax.f32 %v1207, %v1213
        %v1373 = vmax.f32 %v1208, %v1214
        %v1374 = vmax.f32 %v1087, %v1089
        %v1375 = vmax.f32 %v1209, %v1215
        %v1376 = vmax.f32 %v1210, %v1216
        %v1377 = vmax.f32 %v1211, %v1217
        %v1442 = vrot.slane %v1314, 7
        %v1443 = vrot.slane %v1442, 2
        %v1444 = vrot.slane %v1315, 7
        %v1445 = vrot.slane %v1444, 2
        %v1446 = vrot.slane %v1316, 7
        %v1447 = vrot.slane %v1446, 2
        %v1448 = vrot.slane %v1317, 7
        %v1449 = vrot.slane %v1448, 2
        %v1450 = vrot.slane %v1318, 7
        %v1451 = vrot.slane %v1450, 2
        %v1452 = vrot.slane %v1319, 7
        %v1453 = vrot.slane %v1452, 2
        %v1454 = vrot.slane %v1320, 7
        %v1455 = vrot.slane %v1454, 2
        %v1456 = vrot.slane %v1321, 7
        %v1457 = vrot.slane %v1456, 2
        %v1458 = vrot.slane %v1322, 7
        %v1459 = vrot.slane %v1458, 2
        %v1460 = vrot.slane %v1323, 7
        %v1461 = vrot.slane %v1460, 2
        %v1462 = vrot.slane %v1324, 7
        %v1463 = vrot.slane %v1462, 2
        %v1464 = vrot.slane %v1325, 7
        %v1465 = vrot.slane %v1464, 2
        %v1466 = vrot.slane %v1326, 7
        %v1467 = vrot.slane %v1466, 2
        %v1468 = vrot.slane %v1327, 7
        %v1469 = vrot.slane %v1468, 2
        %v1470 = vrot.slane %v1328, 7
        %v1471 = vrot.slane %v1470, 2
        %v1472 = vrot.slane %v1329, 7
        %v1473 = vrot.slane %v1472, 2
        %v1474 = vrot.slane %v1330, 7
        %v1475 = vrot.slane %v1474, 2
        %v1476 = vrot.slane %v1331, 7
        %v1477 = vrot.slane %v1476, 2
        %v1478 = vrot.slane %v1332, 7
        %v1479 = vrot.slane %v1478, 2
        %v1480 = vrot.slane %v1333, 7
        %v1481 = vrot.slane %v1480, 2
        %v1482 = vrot.slane %v1334, 7
        %v1483 = vrot.slane %v1482, 2
        %v1484 = vrot.slane %v1335, 7
        %v1485 = vrot.slane %v1484, 2
        %v1486 = vrot.slane %v1336, 7
        %v1487 = vrot.slane %v1486, 2
        %v1488 = vrot.slane %v1337, 7
        %v1489 = vrot.slane %v1488, 2
        %v1490 = vrot.slane %v1338, 7
        %v1491 = vrot.slane %v1490, 2
        %v1492 = vrot.slane %v1339, 7
        %v1493 = vrot.slane %v1492, 2
        %v1494 = vrot.slane %v1340, 7
        %v1495 = vrot.slane %v1494, 2
        %v1496 = vrot.slane %v1341, 7
        %v1497 = vrot.slane %v1496, 2
        %v1498 = vrot.slane %v1342, 7
        %v1499 = vrot.slane %v1498, 2
        %v1500 = vrot.slane %v1343, 7
        %v1501 = vrot.slane %v1500, 2
        %v1502 = vrot.slane %v1344, 7
        %v1503 = vrot.slane %v1502, 2
        %v1504 = vrot.slane %v1345, 7
        %v1505 = vrot.slane %v1504, 2
        %v1506 = vrot.slane %v1346, 7
        %v1507 = vrot.slane %v1506, 2
        %v1508 = vrot.slane %v1347, 7
        %v1509 = vrot.slane %v1508, 2
        %v1510 = vrot.slane %v1348, 7
        %v1511 = vrot.slane %v1510, 2
        %v1512 = vrot.slane %v1349, 7
        %v1513 = vrot.slane %v1512, 2
        %v1514 = vrot.slane %v1350, 7
        %v1515 = vrot.slane %v1514, 2
        %v1516 = vrot.slane %v1351, 7
        %v1517 = vrot.slane %v1516, 2
        %v1518 = vrot.slane %v1352, 7
        %v1519 = vrot.slane %v1518, 2
        %v1520 = vrot.slane %v1353, 7
        %v1521 = vrot.slane %v1520, 2
        %v1522 = vrot.slane %v1354, 7
        %v1523 = vrot.slane %v1522, 2
        %v1524 = vrot.slane %v1355, 7
        %v1525 = vrot.slane %v1524, 2
        %v1526 = vrot.slane %v1356, 7
        %v1527 = vrot.slane %v1526, 2
        %v1528 = vrot.slane %v1357, 7
        %v1529 = vrot.slane %v1528, 2
        %v1530 = vrot.slane %v1358, 7
        %v1531 = vrot.slane %v1530, 2
        %v1532 = vrot.slane %v1359, 7
        %v1533 = vrot.slane %v1532, 2
        %v1534 = vrot.slane %v1360, 7
        %v1535 = vrot.slane %v1534, 2
        %v1536 = vrot.slane %v1361, 7
        %v1537 = vrot.slane %v1536, 2
        %v1538 = vrot.slane %v1362, 7
        %v1539 = vrot.slane %v1538, 2
        %v1540 = vrot.slane %v1363, 7
        %v1541 = vrot.slane %v1540, 2
        %v1542 = vrot.slane %v1364, 7
        %v1543 = vrot.slane %v1542, 2
        %v1544 = vrot.slane %v1365, 7
        %v1545 = vrot.slane %v1544, 2
        %v1546 = vrot.slane %v1366, 7
        %v1547 = vrot.slane %v1546, 2
        %v1548 = vrot.slane %v1367, 7
        %v1549 = vrot.slane %v1548, 2
        %v1550 = vrot.slane %v1368, 7
        %v1551 = vrot.slane %v1550, 2
        %v1552 = vrot.slane %v1369, 7
        %v1553 = vrot.slane %v1552, 2
        %v1554 = vrot.slane %v1370, 7
        %v1555 = vrot.slane %v1554, 2
        %v1556 = vrot.slane %v1371, 7
        %v1557 = vrot.slane %v1556, 2
        %v1558 = vrot.slane %v1372, 7
        %v1559 = vrot.slane %v1558, 2
        %v1560 = vrot.slane %v1373, 7
        %v1561 = vrot.slane %v1560, 2
        %v1562 = vrot.slane %v1374, 7
        %v1563 = vrot.slane %v1562, 2
        %v1564 = vrot.slane %v1375, 7
        %v1565 = vrot.slane %v1564, 2
        %v1566 = vrot.slane %v1376, 7
        %v1567 = vrot.slane %v1566, 2
        %v1568 = vrot.slane %v1377, 7
        %v1569 = vrot.slane %v1568, 2
        %v1634 = vmax.f32 %v1314, %v1443
        %v1635 = vmax.f32 %v1315, %v1445
        %v1636 = vmax.f32 %v1316, %v1447
        %v1637 = vmax.f32 %v1317, %v1449
        %v1638 = vmax.f32 %v1318, %v1451
        %v1639 = vmax.f32 %v1319, %v1453
        %v1640 = vmax.f32 %v1320, %v1455
        %v1641 = vmax.f32 %v1321, %v1457
        %v1642 = vmax.f32 %v1322, %v1459
        %v1643 = vmax.f32 %v1323, %v1461
        %v1644 = vmax.f32 %v1324, %v1463
        %v1645 = vmax.f32 %v1325, %v1465
        %v1646 = vmax.f32 %v1326, %v1467
        %v1647 = vmax.f32 %v1327, %v1469
        %v1648 = vmax.f32 %v1328, %v1471
        %v1649 = vmax.f32 %v1329, %v1473
        %v1650 = vmax.f32 %v1330, %v1475
        %v1651 = vmax.f32 %v1331, %v1477
        %v1652 = vmax.f32 %v1332, %v1479
        %v1653 = vmax.f32 %v1333, %v1481
        %v1654 = vmax.f32 %v1334, %v1483
        %v1655 = vmax.f32 %v1335, %v1485
        %v1656 = vmax.f32 %v1336, %v1487
        %v1657 = vmax.f32 %v1337, %v1489
        %v1658 = vmax.f32 %v1338, %v1491
        %v1659 = vmax.f32 %v1339, %v1493
        %v1660 = vmax.f32 %v1340, %v1495
        %v1661 = vmax.f32 %v1341, %v1497
        %v1662 = vmax.f32 %v1342, %v1499
        %v1663 = vmax.f32 %v1343, %v1501
        %v1664 = vmax.f32 %v1344, %v1503
        %v1665 = vmax.f32 %v1345, %v1505
        %v1666 = vmax.f32 %v1346, %v1507
        %v1667 = vmax.f32 %v1347, %v1509
        %v1668 = vmax.f32 %v1348, %v1511
        %v1669 = vmax.f32 %v1349, %v1513
        %v1670 = vmax.f32 %v1350, %v1515
        %v1671 = vmax.f32 %v1351, %v1517
        %v1672 = vmax.f32 %v1352, %v1519
        %v1673 = vmax.f32 %v1353, %v1521
        %v1674 = vmax.f32 %v1354, %v1523
        %v1675 = vmax.f32 %v1355, %v1525
        %v1676 = vmax.f32 %v1356, %v1527
        %v1677 = vmax.f32 %v1357, %v1529
        %v1678 = vmax.f32 %v1358, %v1531
        %v1679 = vmax.f32 %v1359, %v1533
        %v1680 = vmax.f32 %v1360, %v1535
        %v1681 = vmax.f32 %v1361, %v1537
        %v1682 = vmax.f32 %v1362, %v1539
        %v1683 = vmax.f32 %v1363, %v1541
        %v1684 = vmax.f32 %v1364, %v1543
        %v1685 = vmax.f32 %v1365, %v1545
        %v1686 = vmax.f32 %v1366, %v1547
        %v1687 = vmax.f32 %v1367, %v1549
        %v1688 = vmax.f32 %v1368, %v1551
        %v1689 = vmax.f32 %v1369, %v1553
        %v1690 = vmax.f32 %v1370, %v1555
        %v1691 = vmax.f32 %v1371, %v1557
        %v1692 = vmax.f32 %v1372, %v1559
        %v1693 = vmax.f32 %v1373, %v1561
        %v1694 = vmax.f32 %v1374, %v1563
        %v1695 = vmax.f32 %v1375, %v1565
        %v1696 = vmax.f32 %v1376, %v1567
        %v1697 = vmax.f32 %v1377, %v1569
        %v1698 = vpack.c.bf16 %v1634, %v1634
        %v1699 = vpack.c.bf16 %v1635, %v1635
        %v1700 = vpack.c.bf16 %v1636, %v1636
        %v1701 = vpack.c.bf16 %v1637, %v1637
        %v1702 = vpack.c.bf16 %v1638, %v1638
        %v1703 = vpack.c.bf16 %v1639, %v1639
        %v1704 = vpack.c.bf16 %v1640, %v1640
        %v1705 = vpack.c.bf16 %v1641, %v1641
        %v1706 = vpack.c.bf16 %v1642, %v1642
        %v1707 = vpack.c.bf16 %v1643, %v1643
        %v1708 = vpack.c.bf16 %v1644, %v1644
        %v1709 = vpack.c.bf16 %v1645, %v1645
        %v1710 = vpack.c.bf16 %v1646, %v1646
        %v1711 = vpack.c.bf16 %v1647, %v1647
        %v1712 = vpack.c.bf16 %v1648, %v1648
        %v1713 = vpack.c.bf16 %v1649, %v1649
        %v1714 = vpack.c.bf16 %v1650, %v1650
        %v1715 = vpack.c.bf16 %v1651, %v1651
        %v1716 = vpack.c.bf16 %v1652, %v1652
        %v1717 = vpack.c.bf16 %v1653, %v1653
        %v1718 = vpack.c.bf16 %v1654, %v1654
        %v1719 = vpack.c.bf16 %v1655, %v1655
        %v1720 = vpack.c.bf16 %v1656, %v1656
        %v1721 = vpack.c.bf16 %v1657, %v1657
        %v1722 = vpack.c.bf16 %v1658, %v1658
        %v1723 = vpack.c.bf16 %v1659, %v1659
        %v1724 = vpack.c.bf16 %v1660, %v1660
        %v1725 = vpack.c.bf16 %v1661, %v1661
        %v1726 = vpack.c.bf16 %v1662, %v1662
        %v1727 = vpack.c.bf16 %v1663, %v1663
        %v1728 = vpack.c.bf16 %v1664, %v1664
        %v1729 = vpack.c.bf16 %v1665, %v1665
        %v1730 = vpack.c.bf16 %v1666, %v1666
        %v1731 = vpack.c.bf16 %v1667, %v1667
        %v1732 = vpack.c.bf16 %v1668, %v1668
        %v1733 = vpack.c.bf16 %v1669, %v1669
        %v1734 = vpack.c.bf16 %v1670, %v1670
        %v1735 = vpack.c.bf16 %v1671, %v1671
        %v1736 = vpack.c.bf16 %v1672, %v1672
        %v1737 = vpack.c.bf16 %v1673, %v1673
        %v1738 = vpack.c.bf16 %v1674, %v1674
        %v1739 = vpack.c.bf16 %v1675, %v1675
        %v1740 = vpack.c.bf16 %v1676, %v1676
        %v1741 = vpack.c.bf16 %v1677, %v1677
        %v1742 = vpack.c.bf16 %v1678, %v1678
        %v1743 = vpack.c.bf16 %v1679, %v1679
        %v1744 = vpack.c.bf16 %v1680, %v1680
        %v1745 = vpack.c.bf16 %v1681, %v1681
        %v1746 = vpack.c.bf16 %v1682, %v1682
        %v1747 = vpack.c.bf16 %v1683, %v1683
        %v1748 = vpack.c.bf16 %v1684, %v1684
        %v1749 = vpack.c.bf16 %v1685, %v1685
        %v1750 = vpack.c.bf16 %v1686, %v1686
        %v1751 = vpack.c.bf16 %v1687, %v1687
        %v1752 = vpack.c.bf16 %v1688, %v1688
        %v1753 = vpack.c.bf16 %v1689, %v1689
        %v1754 = vpack.c.bf16 %v1690, %v1690
        %v1755 = vpack.c.bf16 %v1691, %v1691
        %v1756 = vpack.c.bf16 %v1692, %v1692
        %v1757 = vpack.c.bf16 %v1693, %v1693
        %v1758 = vpack.c.bf16 %v1694, %v1694
        %v1759 = vpack.c.bf16 %v1695, %v1695
        %v1760 = vpack.c.bf16 %v1696, %v1696
        %v1761 = vpack.c.bf16 %v1697, %v1697
        %v1826 = vunpack.c.l.b16 %v1698
        %v1827 = vunpack.c.l.b16 %v1699
        %v1828 = vunpack.c.l.b16 %v1700
        %v1829 = vunpack.c.l.b16 %v1701
        %v1830 = vunpack.c.l.b16 %v1702
        %v1831 = vunpack.c.l.b16 %v1703
        %v1832 = vunpack.c.l.b16 %v1704
        %v1833 = vunpack.c.l.b16 %v1705
        %v1834 = vunpack.c.l.b16 %v1706
        %v1835 = vunpack.c.l.b16 %v1707
        %v1836 = vunpack.c.l.b16 %v1708
        %v1837 = vunpack.c.l.b16 %v1709
        %v1838 = vunpack.c.l.b16 %v1710
        %v1839 = vunpack.c.l.b16 %v1711
        %v1840 = vunpack.c.l.b16 %v1712
        %v1841 = vunpack.c.l.b16 %v1713
        %v1842 = vunpack.c.l.b16 %v1714
        %v1843 = vunpack.c.l.b16 %v1715
        %v1844 = vunpack.c.l.b16 %v1716
        %v1845 = vunpack.c.l.b16 %v1717
        %v1846 = vunpack.c.l.b16 %v1718
        %v1847 = vunpack.c.l.b16 %v1719
        %v1848 = vunpack.c.l.b16 %v1720
        %v1849 = vunpack.c.l.b16 %v1721
        %v1850 = vunpack.c.l.b16 %v1722
        %v1851 = vunpack.c.l.b16 %v1723
        %v1852 = vunpack.c.l.b16 %v1724
        %v1853 = vunpack.c.l.b16 %v1725
        %v1854 = vunpack.c.l.b16 %v1726
        %v1855 = vunpack.c.l.b16 %v1727
        %v1856 = vunpack.c.l.b16 %v1728
        %v1857 = vunpack.c.l.b16 %v1729
        %v1858 = vunpack.c.l.b16 %v1730
        %v1859 = vunpack.c.l.b16 %v1731
        %v1860 = vunpack.c.l.b16 %v1732
        %v1861 = vunpack.c.l.b16 %v1733
        %v1862 = vunpack.c.l.b16 %v1734
        %v1863 = vunpack.c.l.b16 %v1735
        %v1864 = vunpack.c.l.b16 %v1736
        %v1865 = vunpack.c.l.b16 %v1737
        %v1866 = vunpack.c.l.b16 %v1738
        %v1867 = vunpack.c.l.b16 %v1739
        %v1868 = vunpack.c.l.b16 %v1740
        %v1869 = vunpack.c.l.b16 %v1741
        %v1870 = vunpack.c.l.b16 %v1742
        %v1871 = vunpack.c.l.b16 %v1743
        %v1872 = vunpack.c.l.b16 %v1744
        %v1873 = vunpack.c.l.b16 %v1745
        %v1874 = vunpack.c.l.b16 %v1746
        %v1875 = vunpack.c.l.b16 %v1747
        %v1876 = vunpack.c.l.b16 %v1748
        %v1877 = vunpack.c.l.b16 %v1749
        %v1878 = vunpack.c.l.b16 %v1750
        %v1879 = vunpack.c.l.b16 %v1751
        %v1880 = vunpack.c.l.b16 %v1752
        %v1881 = vunpack.c.l.b16 %v1753
        %v1882 = vunpack.c.l.b16 %v1754
        %v1883 = vunpack.c.l.b16 %v1755
        %v1884 = vunpack.c.l.b16 %v1756
        %v1885 = vunpack.c.l.b16 %v1757
        %v1886 = vunpack.c.l.b16 %v1758
        %v1887 = vunpack.c.l.b16 %v1759
        %v1888 = vunpack.c.l.b16 %v1760
        %v1889 = vunpack.c.l.b16 %v1761
        %v1890 = vrot.slane %v1827, 7
        %vm1891 = vcmask 1041409
        %v1892 = vsel %vm1891, %v1890, %v1826
        %v1893 = vrot.slane %v1828, 6
        %vm1894 = vcmask 1042434
        %v1895 = vsel %vm1894, %v1893, %v1892
        %v1896 = vrot.slane %v1829, 5
        %vm1897 = vcmask 1043459
        %v1898 = vsel %vm1897, %v1896, %v1895
        %v1899 = vrot.slane %v1830, 4
        %vm1900 = vcmask 1044484
        %v1901 = vsel %vm1900, %v1899, %v1898
        %v1902 = vrot.slane %v1831, 3
        %vm1903 = vcmask 1045509
        %v1904 = vsel %vm1903, %v1902, %v1901
        %v1905 = vrot.slane %v1832, 2
        %vm1906 = vcmask 1046534
        %v1907 = vsel %vm1906, %v1905, %v1904
        %v1908 = vrot.slane %v1833, 1
        %vm1909 = vcmask 1047559
        %v1910 = vsel %vm1909, %v1908, %v1907
        %v1911 = vrot.slane %v1835, 7
        %v1912 = vsel %vm1891, %v1911, %v1834
        %v1913 = vrot.slane %v1836, 6
        %v1914 = vsel %vm1894, %v1913, %v1912
        %v1915 = vrot.slane %v1837, 5
        %v1916 = vsel %vm1897, %v1915, %v1914
        %v1917 = vrot.slane %v1838, 4
        %v1918 = vsel %vm1900, %v1917, %v1916
        %v1919 = vrot.slane %v1839, 3
        %v1920 = vsel %vm1903, %v1919, %v1918
        %v1921 = vrot.slane %v1840, 2
        %v1922 = vsel %vm1906, %v1921, %v1920
        %v1923 = vrot.slane %v1841, 1
        %v1924 = vsel %vm1909, %v1923, %v1922
        %v1925 = vrot.slane %v1843, 7
        %v1926 = vsel %vm1891, %v1925, %v1842
        %v1927 = vrot.slane %v1844, 6
        %v1928 = vsel %vm1894, %v1927, %v1926
        %v1929 = vrot.slane %v1845, 5
        %v1930 = vsel %vm1897, %v1929, %v1928
        %v1931 = vrot.slane %v1846, 4
        %v1932 = vsel %vm1900, %v1931, %v1930
        %v1933 = vrot.slane %v1847, 3
        %v1934 = vsel %vm1903, %v1933, %v1932
        %v1935 = vrot.slane %v1848, 2
        %v1936 = vsel %vm1906, %v1935, %v1934
        %v1937 = vrot.slane %v1849, 1
        %v1938 = vsel %vm1909, %v1937, %v1936
        %v1939 = vrot.slane %v1851, 7
        %v1940 = vsel %vm1891, %v1939, %v1850
        %v1941 = vrot.slane %v1852, 6
        %v1942 = vsel %vm1894, %v1941, %v1940
        %v1943 = vrot.slane %v1853, 5
        %v1944 = vsel %vm1897, %v1943, %v1942
        %v1945 = vrot.slane %v1854, 4
        %v1946 = vsel %vm1900, %v1945, %v1944
        %v1947 = vrot.slane %v1855, 3
        %v1948 = vsel %vm1903, %v1947, %v1946
        %v1949 = vrot.slane %v1856, 2
        %v1950 = vsel %vm1906, %v1949, %v1948
        %v1951 = vrot.slane %v1857, 1
        %v1952 = vsel %vm1909, %v1951, %v1950
        %v1953 = vrot.slane %v1859, 7
        %v1954 = vsel %vm1891, %v1953, %v1858
        %v1955 = vrot.slane %v1860, 6
        %v1956 = vsel %vm1894, %v1955, %v1954
        %v1957 = vrot.slane %v1861, 5
        %v1958 = vsel %vm1897, %v1957, %v1956
        %v1959 = vrot.slane %v1862, 4
        %v1960 = vsel %vm1900, %v1959, %v1958
        %v1961 = vrot.slane %v1863, 3
        %v1962 = vsel %vm1903, %v1961, %v1960
        %v1963 = vrot.slane %v1864, 2
        %v1964 = vsel %vm1906, %v1963, %v1962
        %v1965 = vrot.slane %v1865, 1
        %v1966 = vsel %vm1909, %v1965, %v1964
        %v1967 = vrot.slane %v1867, 7
        %v1968 = vsel %vm1891, %v1967, %v1866
        %v1969 = vrot.slane %v1868, 6
        %v1970 = vsel %vm1894, %v1969, %v1968
        %v1971 = vrot.slane %v1869, 5
        %v1972 = vsel %vm1897, %v1971, %v1970
        %v1973 = vrot.slane %v1870, 4
        %v1974 = vsel %vm1900, %v1973, %v1972
        %v1975 = vrot.slane %v1871, 3
        %v1976 = vsel %vm1903, %v1975, %v1974
        %v1977 = vrot.slane %v1872, 2
        %v1978 = vsel %vm1906, %v1977, %v1976
        %v1979 = vrot.slane %v1873, 1
        %v1980 = vsel %vm1909, %v1979, %v1978
        %v1981 = vrot.slane %v1875, 7
        %v1982 = vsel %vm1891, %v1981, %v1874
        %v1983 = vrot.slane %v1876, 6
        %v1984 = vsel %vm1894, %v1983, %v1982
        %v1985 = vrot.slane %v1877, 5
        %v1986 = vsel %vm1897, %v1985, %v1984
        %v1987 = vrot.slane %v1878, 4
        %v1988 = vsel %vm1900, %v1987, %v1986
        %v1989 = vrot.slane %v1879, 3
        %v1990 = vsel %vm1903, %v1989, %v1988
        %v1991 = vrot.slane %v1880, 2
        %v1992 = vsel %vm1906, %v1991, %v1990
        %v1993 = vrot.slane %v1881, 1
        %v1994 = vsel %vm1909, %v1993, %v1992
        %v1995 = vrot.slane %v1883, 7
        %v1996 = vsel %vm1891, %v1995, %v1882
        %v1997 = vrot.slane %v1884, 6
        %v1998 = vsel %vm1894, %v1997, %v1996
        %v1999 = vrot.slane %v1885, 5
        %v2000 = vsel %vm1897, %v1999, %v1998
        %v2001 = vrot.slane %v1886, 4
        %v2002 = vsel %vm1900, %v2001, %v2000
        %v2003 = vrot.slane %v1887, 3
        %v2004 = vsel %vm1903, %v2003, %v2002
        %v2005 = vrot.slane %v1888, 2
        %v2006 = vsel %vm1906, %v2005, %v2004
        %v2007 = vrot.slane %v1889, 1
        %v2008 = vsel %vm1909, %v2007, %v2006
        %v2009 = vpack.c.b16 %v1910, %v1910
        %v2010 = vpack.c.b16 %v1924, %v1924
        %v2011 = vpack.c.b16 %v1938, %v1938
        %v2012 = vpack.c.b16 %v1952, %v1952
        %v2013 = vpack.c.b16 %v1966, %v1966
        %v2014 = vpack.c.b16 %v1980, %v1980
        %v2015 = vpack.c.b16 %v1994, %v1994
        %v2016 = vpack.c.b16 %v2008, %v2008
        %vm2025 = vcmask 519168
        %2026 = vst.msk [vmem:[%s225] sm:$0xf] %vm2025, %v2009
        %2027 = vst.msk [vmem:[%s225 + $0x4] sm:$0xf] %vm2025, %v2010
        %2028 = vst.msk [vmem:[%s225 + $0x8] sm:$0xf] %vm2025, %v2011
        %2029 = vst.msk [vmem:[%s225 + $0xc] sm:$0xf] %vm2025, %v2012
        %2030 = vst.msk [vmem:[%s225 + $0x10] sm:$0xf] %vm2025, %v2013
        %2031 = vst.msk [vmem:[%s225 + $0x14] sm:$0xf] %vm2025, %v2014
        %2032 = vst.msk [vmem:[%s225 + $0x18] sm:$0xf] %vm2025, %v2015
        %2033 = vst.msk [vmem:[%s225 + $0x1c] sm:$0xf] %vm2025, %v2016
        %s2034 = sand.u32 %s113, 1
        %s2035 = scalar_lea.sflag [#allocation4], %s2034
        %s2036 = sand.u32 %s113, 1
        %s2037 = smul.addr %s2036, 32
        %s2038 = scalar_lea.vmem [#allocation7], %s2037
        // Predicated region
        $region41: #{tpu_custom_call.1} parent=31 // pred_check
          %p2039 = pneg %p123
        $region42: #{tpu_custom_call.1} parent=31 // pred_check_branch
          %2041 = sbr.rel (%p2039) target = $region44
        $region43: #{tpu_custom_call.1} parent=31 // pred_region
          %2043 = vsyncadd %s2035, 0
          %s2044 = smul.addr %s26, 8
          %s2045 = smul.addr %s25, 8
          %s2046 = sadd.s32 %s2044, %s2045
          %s2047 = smul.addr %s2046, 4
          %s2048 = scalar_lea.hbm %s3, %s2047
          %s2049 = sshll.u32 %s2038, 4
          %s2050 = int_to_ptr.vmem [resolvable:$true] %s2049
          %s2051 = sshll.u32 %s2048, 4
          %s2052 = int_to_ptr.hbm [resolvable:$true] %s2051
          %2057 = dma.vmem_to_hbm [thread:$0]  %s2050, 512, %s2052, %s2035, 64, 64, 4
        $region44: #{tpu_custom_call.1} parent=31 // pred_fallthru
          _
      $region32: #{tpu_custom_call.1} parent=5 // pred_fallthru
        _
      %p2058 = scmp.le.s32.totalorder 2, %s16
      // Predicated region
      $region45: #{tpu_custom_call.1} parent=5 // pred_check
        %p2059 = pneg %p2058
      $region46: #{tpu_custom_call.1} parent=5 // pred_check_branch
        %2061 = sbr.rel (%p2059) target = $region48
      $region47: #{tpu_custom_call.1} parent=5 // pred_region
        %s2062 = ssub.s32 %s16, 2
        // Predicated region
        $region49: #{tpu_custom_call.1} parent=47 // pred_check
          %p2063 = pneg %p129
        $region50: #{tpu_custom_call.1} parent=47 // pred_check_branch
          %2065 = sbr.rel (%p2063) target = $region52
        $region51: #{tpu_custom_call.1} parent=47 // pred_region
          %s2066 = sand.u32 %s114, 1
          %s2067 = scalar_lea.sflag [#allocation4], %s2066
          %s2068 = sand.u32 %s114, 1
          %s2069 = smul.addr %s2068, 32
          %s2070 = scalar_lea.vmem [#allocation7], %s2069
          %2072 = dma.done %s2067, 512
        $region52: #{tpu_custom_call.1} parent=47 // pred_fallthru
          _
      $region48: #{tpu_custom_call.1} parent=5 // pred_fallthru
        _
    $region6: #{tpu_custom_call.1} parent=1 // loop_footer
      %s20 = sadd.s32 1, %s16
    $region7: #{tpu_custom_call.1} parent=1 // loop_footer_branch
      %15 = sbr.rel target = $region3
    $region8: #{tpu_custom_call.1} parent=1 // loop_exit
      _
    %2073 = vsyncpa [#allocation3], 1
    %s2074 = scalar_lea.sflag [#allocation3], 1
    %2075 = vsyncpa %s2074, 1
    %2076 = vsyncpa [#allocation6], 1
    %2077 = vsyncpa [#allocation4], 1
    %s2078 = scalar_lea.sflag [#allocation4], 1
    %2079 = vsyncpa %s2078, 1

</llo_original>
